<compile_context>
chip_gen: v7x
topology: tpu7x:2x2x1
jax: 0.10.0
libtpu: 0.0.40
codegen_flags: <defaults>
</compile_context>

<pallas_src>
import functools

import jax
import jax.numpy as jnp
from jax.experimental import pallas as pl
from jax.experimental.pallas import tpu as pltpu


def rgat_kernel(src_ref, dst_ref, r_ref, h_ref,
                wm_ref, a_src_blk_ref, a_dst_blk_ref, rep_ref,
                wr_ref, bm1_ref, wm2_ref, bm2_ref,
                w_out_ref, b_out_ref,
                out_ref,
                wh_scr, sdst_scr, msg_scr, den_scr,
                *, num_heads, out_dim, num_nodes):
    f32 = jnp.float32
    bf16 = jnp.bfloat16
    M, D, N = num_heads, out_dim, num_nodes
    MD = M * D
    TE = src_ref.shape[0]
    e_step = pl.program_id(0)

    # ---- one-time node-side precompute + accumulator init -------------------
    @pl.when(e_step == 0)
    def _init():
        # All heads in one matmul: [N, in_dim] @ [in_dim, M*D]
        wh = jnp.dot(h_ref[...], wm_ref[...], preferred_element_type=f32)
        wh_scr[...] = wh.astype(bf16)
        # Per-node destination attention scores: [N, M]
        sdst_scr[...] = jnp.dot(wh, a_dst_blk_ref[...],
                                preferred_element_type=f32).astype(bf16)
        msg_scr[...] = jnp.zeros_like(msg_scr)
        den_scr[...] = jnp.zeros_like(den_scr)

    # ---- per-edge-tile work --------------------------------------------------
    # In-kernel bf16 one-hot tiles (padded edges carry index N -> all-zero row).
    col = jax.lax.broadcasted_iota(jnp.int32, (TE, N), 1)
    src_oh = (src_ref[...] == col).astype(bf16)          # [TE, N]
    dst_oh = (dst_ref[...] == col).astype(bf16)          # [TE, N]

    # Gather: all heads' Wh rows for the source nodes, dst-side scores.
    wh_src = jnp.dot(src_oh, wh_scr[...], preferred_element_type=f32)   # [TE, MD]
    s_dst = jnp.dot(dst_oh, sdst_scr[...], preferred_element_type=f32)  # [TE, M]
    s_src = jnp.dot(wh_src, a_src_blk_ref[...],
                    preferred_element_type=f32)                          # [TE, M]

    score = s_src + s_dst
    score = jnp.where(score > 0, score, 0.2 * score)      # LeakyReLU(0.2)
    attn_alpha = jnp.exp(score)                           # [TE, M] (un-normalised)

    # Relational edge score (identical across heads).
    rel_h = jnp.maximum(
        jnp.dot(r_ref[...], wr_ref[...], preferred_element_type=f32)
        + bm1_ref[...], 0.0)                               # [TE, D]
    rel_score = jnp.dot(rel_h, wm2_ref[...],
                        preferred_element_type=f32) + bm2_ref[0, 0]
    rel_alpha = jnp.exp(rel_score)                         # [TE, 1]

    # Broadcast per-head alpha over its D lanes via the head-expansion matrix.
    attn_alpha_w = jnp.dot(attn_alpha, rep_ref[...],
                           preferred_element_type=f32)     # [TE, MD]

    msg = jnp.concatenate([wh_src * attn_alpha_w,          # attention messages
                           wh_src * rel_alpha], axis=-1)   # relational messages
    den = jnp.concatenate([attn_alpha, rel_alpha], axis=-1)  # [TE, M+1]

    # Scatter-add to destination nodes: contract the edge axis directly.
    dn = (((0,), (0,)), ((), ()))
    msg_scr[...] += jax.lax.dot_general(dst_oh, msg.astype(bf16), dn,
                                        preferred_element_type=f32)
    den_scr[...] += jax.lax.dot_general(dst_oh, den.astype(bf16), dn,
                                        preferred_element_type=f32)

    # ---- finalize on the last edge tile -------------------------------------
    @pl.when(e_step == pl.num_programs(0) - 1)
    def _finalize():
        msgs = msg_scr[...]                                # [N, 2*MD]
        dens = den_scr[...]                                # [N, M+1]
        attn_den = jnp.dot(dens[:, :M], rep_ref[...],
                           preferred_element_type=f32)     # [N, MD]
        attn_norm = msgs[:, :MD] / (attn_den + 1e-9)
        rel_norm = msgs[:, MD:] / (dens[:, M:M + 1] + 1e-9)
        x = jnp.concatenate([attn_norm, rel_norm], axis=-1)  # [N, 2*MD]
        y = jnp.dot(x, w_out_ref[...], preferred_element_type=f32) + b_out_ref[...]
        out_ref[...] = jnp.maximum(y, 0.0)


def relational_graph_attention(h, edge_index, r_ij, params, *,
                               num_heads, out_dim, edge_tile=16):
    f32 = jnp.float32
    N, in_dim = h.shape
    M, D = num_heads, out_dim
    MD = M * D
    r_dim = r_ij.shape[1]
    E = edge_index.shape[1]
    D_PAD = 128                       # lane-dense output (unmasked vst)

    TE = edge_tile
    num_tiles = pl.cdiv(E, TE)
    E_pad = num_tiles * TE

    src = edge_index[0].astype(jnp.int32)
    dst = edge_index[1].astype(jnp.int32)
    r = r_ij.astype(f32)
    if E_pad != E:
        pad = E_pad - E
        # Padded edges point at node index N -> all-zero one-hot rows.
        src = jnp.concatenate([src, jnp.full((pad,), N, jnp.int32)])
        dst = jnp.concatenate([dst, jnp.full((pad,), N, jnp.int32)])
        r = jnp.concatenate([r, jnp.zeros((pad, r_dim), f32)], axis=0)
    src = src.reshape(E_pad, 1)
    dst = dst.reshape(E_pad, 1)

    # Heads stacked on the lane axis.
    wm_all = jnp.transpose(params["W_m"], (1, 0, 2)).reshape(in_dim, MD).astype(f32)
    a_src = params["attn_fc"][:D].astype(f32)              # [D, 1]
    a_dst = params["attn_fc"][D:].astype(f32)              # [D, 1]
    eye_m = jnp.eye(M, dtype=f32)
    a_src_blk = jnp.kron(eye_m, a_src)                     # [MD, M] block diag
    a_dst_blk = jnp.kron(eye_m, a_dst)                     # [MD, M]
    rep = jnp.kron(eye_m, jnp.ones((1, D), f32))           # [M, MD] head expand

    bm1 = params["bm1"].reshape(1, D).astype(f32)
    bm2 = params["bm2"].reshape(1, 1).astype(f32)          # scalar -> SMEM
    w_out = jnp.pad(params["W_out"].astype(f32), ((0, 0), (0, D_PAD - D)))
    b_out = jnp.pad(params["b_out"].reshape(1, D).astype(f32),
                    ((0, 0), (0, D_PAD - D)))

    kernel = functools.partial(rgat_kernel, num_heads=M, out_dim=D, num_nodes=N)

    grid_spec = pltpu.PrefetchScalarGridSpec(
        num_scalar_prefetch=0,
        grid=(num_tiles,),
        in_specs=[
            pl.BlockSpec((TE, 1), lambda e: (e, 0)),            # src ids
            pl.BlockSpec((TE, 1), lambda e: (e, 0)),            # dst ids
            pl.BlockSpec((TE, r_dim), lambda e: (e, 0)),        # r_ij tile
            pl.BlockSpec((N, in_dim), lambda e: (0, 0)),        # h (resident)
            pl.BlockSpec((in_dim, MD), lambda e: (0, 0)),       # W_m stacked
            pl.BlockSpec((MD, M), lambda e: (0, 0)),            # a_src block-diag
            pl.BlockSpec((MD, M), lambda e: (0, 0)),            # a_dst block-diag
            pl.BlockSpec((M, MD), lambda e: (0, 0)),            # head expansion
            pl.BlockSpec((r_dim, D), lambda e: (0, 0)),         # W_r
            pl.BlockSpec((1, D), lambda e: (0, 0)),             # bm1
            pl.BlockSpec((D, 1), lambda e: (0, 0)),             # W_m2
            pl.BlockSpec(memory_space=pltpu.MemorySpace.SMEM),  # bm2 scalar
            pl.BlockSpec((2 * MD, D_PAD), lambda e: (0, 0)),    # W_out (padded)
            pl.BlockSpec((1, D_PAD), lambda e: (0, 0)),         # b_out (padded)
        ],
        out_specs=pl.BlockSpec((N, D_PAD), lambda e: (0, 0)),
        scratch_shapes=[
            pltpu.VMEM((N, MD), jnp.bfloat16),      # Wh for all heads
            pltpu.VMEM((N, M), jnp.bfloat16),       # per-node dst scores
            pltpu.VMEM((N, 2 * MD), jnp.float32),   # message accumulator
            pltpu.VMEM((N, M + 1), jnp.float32),    # denominator accumulator
        ],
    )

    out = pl.pallas_call(
        kernel,
        out_shape=jax.ShapeDtypeStruct((N, D_PAD), f32),
        grid_spec=grid_spec,
        compiler_params=pltpu.CompilerParams(
            dimension_semantics=("arbitrary",),       # edge axis is a reduction
            vmem_limit_bytes=32 * 1024 * 1024,
        ),
    )(src, dst, r, h.astype(f32), wm_all, a_src_blk, a_dst_blk, rep,
      params["W_r"].astype(f32), bm1, params["W_m2"].astype(f32), bm2,
      w_out, b_out)
    return out[:, :D]


def reference_forward(h, edge_index, r_ij, params, *, num_heads, out_dim):
    """Plain-JAX reference mirroring the PyTorch forward (scatter via .at[].add)."""
    N = h.shape[0]
    src, dst = edge_index[0], edge_index[1]
    att_all, rel_all = [], []
    for m in range(num_heads):
        Wh = h @ params["W_m"][m]
        Wh_src, Wh_dst = Wh[src], Wh[dst]
        rel = jax.nn.relu(r_ij @ params["W_r"] + params["bm1"])
        rel_score = (rel @ params["W_m2"]).squeeze(-1) + params["bm2"][0]
        rel_alpha = jnp.exp(rel_score)
        rel_denom = jnp.zeros(N).at[dst].add(rel_alpha)
        beta = rel_alpha / (rel_denom[dst] + 1e-9)
        rel_all.append(jnp.zeros((N, out_dim)).at[dst].add(Wh_src * beta[:, None]))
        s = jnp.concatenate([Wh_src, Wh_dst], -1) @ params["attn_fc"]
        s = jnp.where(s > 0, s, 0.2 * s).squeeze(-1)
        a = jnp.exp(s)
        d = jnp.zeros(N).at[dst].add(a)
        alpha = a / (d[dst] + 1e-9)
        att_all.append(jnp.zeros((N, out_dim)).at[dst].add(Wh_src * alpha[:, None]))
    x = jnp.concatenate(att_all + rel_all, -1)
    return jax.nn.relu(x @ params["W_out"] + params["b_out"])


if __name__ == "__main__":
    # Small problem sizes consistent with the module's forward.
    N, E = 16, 32          # nodes, edges
    IN_DIM, OUT_DIM, R_DIM, M = 32, 16, 8, 2

    key = jax.random.PRNGKey(0)
    ks = jax.random.split(key, 8)

    def uniform(k, shape, fan_in):
        b = 1.0 / jnp.sqrt(fan_in)
        return jax.random.uniform(k, shape, jnp.float32, -b, b)

    params = {
        "W_m":     uniform(ks[0], (M, IN_DIM, OUT_DIM), IN_DIM),
        "W_r":     uniform(ks[1], (R_DIM, OUT_DIM), R_DIM),
        "bm1":     jnp.zeros((OUT_DIM,), jnp.float32),
        "W_m2":    uniform(ks[2], (OUT_DIM, 1), OUT_DIM),
        "bm2":     jnp.zeros((1,), jnp.float32),
        "attn_fc": uniform(ks[3], (2 * OUT_DIM, 1), 2 * OUT_DIM),
        "W_out":   uniform(ks[4], (2 * OUT_DIM * M, OUT_DIM), 2 * OUT_DIM * M),
        "b_out":   uniform(ks[5], (OUT_DIM,), 2 * OUT_DIM * M),
    }

    h = jax.random.normal(ks[6], (N, IN_DIM), jnp.float32)
    r_ij = jax.random.normal(ks[7], (E, R_DIM), jnp.float32)
    ek = jax.random.split(jax.random.PRNGKey(1), 2)
    edge_index = jnp.stack([
        jax.random.randint(ek[0], (E,), 0, N),
        jax.random.randint(ek[1], (E,), 0, N),
    ]).astype(jnp.int32)

    out = relational_graph_attention(h, edge_index, r_ij, params,
                                     num_heads=M, out_dim=OUT_DIM, edge_tile=16)
    out = jax.block_until_ready(out)

    ref = reference_forward(h, edge_index, r_ij, params,
                            num_heads=M, out_dim=OUT_DIM)
    assert out.shape == (N, OUT_DIM)
    assert jnp.allclose(out, ref, atol=2e-2, rtol=2e-2), (
        f"max abs err {jnp.max(jnp.abs(out - ref))}")
    print("KERNEL_OK")
</pallas_src>

<mosaic_0001>
module attributes {stable_mosaic.version = 11 : i64} {
  func.func @rgat_kernel(%arg0: i32, %arg1: memref<16x1xi32, #tpu.memory_space<vmem>>, %arg2: memref<16x1xi32, #tpu.memory_space<vmem>>, %arg3: memref<16x8xf32, #tpu.memory_space<vmem>>, %arg4: memref<16x32xf32, #tpu.memory_space<vmem>>, %arg5: memref<32x32xf32, #tpu.memory_space<vmem>>, %arg6: memref<32x2xf32, #tpu.memory_space<vmem>>, %arg7: memref<32x2xf32, #tpu.memory_space<vmem>>, %arg8: memref<2x32xf32, #tpu.memory_space<vmem>>, %arg9: memref<8x16xf32, #tpu.memory_space<vmem>>, %arg10: memref<1x16xf32, #tpu.memory_space<vmem>>, %arg11: memref<16x1xf32, #tpu.memory_space<vmem>>, %arg12: memref<1x1xf32, #tpu.memory_space<smem>>, %arg13: memref<64x128xf32, #tpu.memory_space<vmem>>, %arg14: memref<1x128xf32, #tpu.memory_space<vmem>>, %arg15: memref<16x128xf32, #tpu.memory_space<vmem>>, %arg16: memref<16x32xbf16, #tpu.memory_space<vmem>>, %arg17: memref<16x2xbf16, #tpu.memory_space<vmem>>, %arg18: memref<16x64xf32, #tpu.memory_space<vmem>>, %arg19: memref<16x3xf32, #tpu.memory_space<vmem>>) attributes {dimension_semantics = [#tpu.dimension_semantics<arbitrary>], iteration_bounds = array<i64: 2>, scalar_prefetch = 0 : i64, scratch_operands = 4 : i64, tpu.core_type = #tpu.core_type<tc>, window_params = [{transform_indices = @transform_0, window_bounds = array<i64: 16, 1>}, {transform_indices = @transform_1, window_bounds = array<i64: 16, 1>}, {transform_indices = @transform_2, window_bounds = array<i64: 16, 8>}, {pipeline_mode = #tpu.pipeline_mode<synchronous>, transform_indices = @transform_3, window_bounds = array<i64: 16, 32>}, {pipeline_mode = #tpu.pipeline_mode<synchronous>, transform_indices = @transform_4, window_bounds = array<i64: 32, 32>}, {pipeline_mode = #tpu.pipeline_mode<synchronous>, transform_indices = @transform_5, window_bounds = array<i64: 32, 2>}, {pipeline_mode = #tpu.pipeline_mode<synchronous>, transform_indices = @transform_6, window_bounds = array<i64: 32, 2>}, {pipeline_mode = #tpu.pipeline_mode<synchronous>, transform_indices = @transform_7, window_bounds = array<i64: 2, 32>}, {pipeline_mode = #tpu.pipeline_mode<synchronous>, transform_indices = @transform_8, window_bounds = array<i64: 8, 16>}, {pipeline_mode = #tpu.pipeline_mode<synchronous>, transform_indices = @transform_9, window_bounds = array<i64: 1, 16>}, {pipeline_mode = #tpu.pipeline_mode<synchronous>, transform_indices = @transform_10, window_bounds = array<i64: 16, 1>}, {transform_indices = @transform_11, window_bounds = array<i64: 1, 1>}, {pipeline_mode = #tpu.pipeline_mode<synchronous>, transform_indices = @transform_12, window_bounds = array<i64: 64, 128>}, {pipeline_mode = #tpu.pipeline_mode<synchronous>, transform_indices = @transform_13, window_bounds = array<i64: 1, 128>}, {pipeline_mode = #tpu.pipeline_mode<synchronous>, transform_indices = @transform_14, window_bounds = array<i64: 16, 128>}]} {
    %c0_i32 = arith.constant 0 : i32
    %0 = arith.cmpi eq, %arg0, %c0_i32 : i32
    %1 = arith.extui %0 : i1 to i32
    %c0_i32_0 = arith.constant 0 : i32
    %2 = arith.cmpi ne, %1, %c0_i32_0 : i32
    scf.if %2 {
      %c0_41 = arith.constant 0 : index
      %c0_42 = arith.constant 0 : index
      %63 = vector.load %arg4[%c0_41, %c0_42] : memref<16x32xf32, #tpu.memory_space<vmem>>, vector<16x32xf32>
      %c0_43 = arith.constant 0 : index
      %c0_44 = arith.constant 0 : index
      %64 = vector.load %arg5[%c0_43, %c0_44] : memref<32x32xf32, #tpu.memory_space<vmem>>, vector<32x32xf32>
      %cst_45 = arith.constant dense<0.000000e+00> : vector<16x32xf32>
      %65 = tpu.matmul %63, %64, %cst_45 {dimension_numbers = #tpu.dot_dimension_numbers<[1], [0], [0], [1], [0, 0, 1, 1], [], []>} : vector<16x32xf32>, vector<32x32xf32>, vector<16x32xf32> -> vector<16x32xf32>
      %66 = arith.truncf %65 : vector<16x32xf32> to vector<16x32xbf16>
      %c0_46 = arith.constant 0 : index
      %c0_47 = arith.constant 0 : index
      %67 = vector.load %arg16[%c0_46, %c0_47] : memref<16x32xbf16, #tpu.memory_space<vmem>>, vector<16x32xbf16>
      tpu.vector_store %arg16[%c0_46, %c0_47], %66 {strides = array<i32>} : memref<16x32xbf16, #tpu.memory_space<vmem>>, vector<16x32xbf16>,
      %c0_48 = arith.constant 0 : index
      %c0_49 = arith.constant 0 : index
      %68 = vector.load %arg7[%c0_48, %c0_49] : memref<32x2xf32, #tpu.memory_space<vmem>>, vector<32x2xf32>
      %cst_50 = arith.constant dense<0.000000e+00> : vector<16x2xf32>
      %69 = tpu.matmul %65, %68, %cst_50 {dimension_numbers = #tpu.dot_dimension_numbers<[1], [0], [0], [1], [0, 0, 1, 1], [], []>} : vector<16x32xf32>, vector<32x2xf32>, vector<16x2xf32> -> vector<16x2xf32>
      %70 = arith.truncf %69 : vector<16x2xf32> to vector<16x2xbf16>
      %c0_51 = arith.constant 0 : index
      %c0_52 = arith.constant 0 : index
      %71 = vector.load %arg17[%c0_51, %c0_52] : memref<16x2xbf16, #tpu.memory_space<vmem>>, vector<16x2xbf16>
      tpu.vector_store %arg17[%c0_51, %c0_52], %70 {strides = array<i32>} : memref<16x2xbf16, #tpu.memory_space<vmem>>, vector<16x2xbf16>,
      %cst_53 = arith.constant 0.000000e+00 : f32
      %72 = vector.broadcast %cst_53 : f32 to vector<16x64xf32>
      %c0_54 = arith.constant 0 : index
      %c0_55 = arith.constant 0 : index
      %73 = vector.load %arg18[%c0_54, %c0_55] : memref<16x64xf32, #tpu.memory_space<vmem>>, vector<16x64xf32>
      tpu.vector_store %arg18[%c0_54, %c0_55], %72 {strides = array<i32>} : memref<16x64xf32, #tpu.memory_space<vmem>>, vector<16x64xf32>,
      %cst_56 = arith.constant 0.000000e+00 : f32
      %74 = vector.broadcast %cst_56 : f32 to vector<16x3xf32>
      %c0_57 = arith.constant 0 : index
      %c0_58 = arith.constant 0 : index
      %75 = vector.load %arg19[%c0_57, %c0_58] : memref<16x3xf32, #tpu.memory_space<vmem>>, vector<16x3xf32>
      tpu.vector_store %arg19[%c0_57, %c0_58], %74 {strides = array<i32>} : memref<16x3xf32, #tpu.memory_space<vmem>>, vector<16x3xf32>,
    } else {
    }
    %3 = tpu.iota {dimensions = array<i32: 1>} : vector<16x16xi32>
    %c0 = arith.constant 0 : index
    %c0_1 = arith.constant 0 : index
    %4 = vector.load %arg1[%c0, %c0_1] : memref<16x1xi32, #tpu.memory_space<vmem>>, vector<16x1xi32>
    %5 = vector.broadcast %4 : vector<16x1xi32> to vector<16x16xi32>
    %6 = arith.cmpi eq, %5, %3 : vector<16x16xi32>
    %7 = arith.extui %6 : vector<16x16xi1> to vector<16x16xi32>
    %8 = arith.sitofp %7 : vector<16x16xi32> to vector<16x16xf32>
    %9 = arith.truncf %8 : vector<16x16xf32> to vector<16x16xbf16>
    %c0_2 = arith.constant 0 : index
    %c0_3 = arith.constant 0 : index
    %10 = vector.load %arg2[%c0_2, %c0_3] : memref<16x1xi32, #tpu.memory_space<vmem>>, vector<16x1xi32>
    %11 = vector.broadcast %10 : vector<16x1xi32> to vector<16x16xi32>
    %12 = arith.cmpi eq, %11, %3 : vector<16x16xi32>
    %13 = arith.extui %12 : vector<16x16xi1> to vector<16x16xi32>
    %14 = arith.sitofp %13 : vector<16x16xi32> to vector<16x16xf32>
    %15 = arith.truncf %14 : vector<16x16xf32> to vector<16x16xbf16>
    %c0_4 = arith.constant 0 : index
    %c0_5 = arith.constant 0 : index
    %16 = vector.load %arg16[%c0_4, %c0_5] : memref<16x32xbf16, #tpu.memory_space<vmem>>, vector<16x32xbf16>
    %cst = arith.constant dense<0.000000e+00> : vector<16x32xf32>
    %17 = tpu.matmul %9, %16, %cst {dimension_numbers = #tpu.dot_dimension_numbers<[1], [0], [0], [1], [0, 0, 1, 1], [], []>} : vector<16x16xbf16>, vector<16x32xbf16>, vector<16x32xf32> -> vector<16x32xf32>
    %c0_6 = arith.constant 0 : index
    %c0_7 = arith.constant 0 : index
    %18 = vector.load %arg17[%c0_6, %c0_7] : memref<16x2xbf16, #tpu.memory_space<vmem>>, vector<16x2xbf16>
    %cst_8 = arith.constant dense<0.000000e+00> : vector<16x2xf32>
    %19 = tpu.matmul %15, %18, %cst_8 {dimension_numbers = #tpu.dot_dimension_numbers<[1], [0], [0], [1], [0, 0, 1, 1], [], []>} : vector<16x16xbf16>, vector<16x2xbf16>, vector<16x2xf32> -> vector<16x2xf32>
    %c0_9 = arith.constant 0 : index
    %c0_10 = arith.constant 0 : index
    %20 = vector.load %arg6[%c0_9, %c0_10] : memref<32x2xf32, #tpu.memory_space<vmem>>, vector<32x2xf32>
    %cst_11 = arith.constant dense<0.000000e+00> : vector<16x2xf32>
    %21 = tpu.matmul %17, %20, %cst_11 {dimension_numbers = #tpu.dot_dimension_numbers<[1], [0], [0], [1], [0, 0, 1, 1], [], []>} : vector<16x32xf32>, vector<32x2xf32>, vector<16x2xf32> -> vector<16x2xf32>
    %22 = arith.addf %21, %19 : vector<16x2xf32>
    %cst_12 = arith.constant 0.000000e+00 : f32
    %23 = vector.broadcast %cst_12 : f32 to vector<16x2xf32>
    %24 = arith.cmpf ogt, %22, %23 : vector<16x2xf32>
    %cst_13 = arith.constant 2.000000e-01 : f32
    %25 = vector.broadcast %cst_13 : f32 to vector<16x2xf32>
    %26 = arith.mulf %25, %22 : vector<16x2xf32>
    %27 = arith.select %24, %22, %26 : vector<16x2xi1>, vector<16x2xf32>
    %28 = math.exp %27 : vector<16x2xf32>
    %c0_14 = arith.constant 0 : index
    %c0_15 = arith.constant 0 : index
    %29 = vector.load %arg3[%c0_14, %c0_15] : memref<16x8xf32, #tpu.memory_space<vmem>>, vector<16x8xf32>
    %c0_16 = arith.constant 0 : index
    %c0_17 = arith.constant 0 : index
    %30 = vector.load %arg9[%c0_16, %c0_17] : memref<8x16xf32, #tpu.memory_space<vmem>>, vector<8x16xf32>
    %cst_18 = arith.constant dense<0.000000e+00> : vector<16x16xf32>
    %31 = tpu.matmul %29, %30, %cst_18 {dimension_numbers = #tpu.dot_dimension_numbers<[1], [0], [0], [1], [0, 0, 1, 1], [], []>} : vector<16x8xf32>, vector<8x16xf32>, vector<16x16xf32> -> vector<16x16xf32>
    %c0_19 = arith.constant 0 : index
    %c0_20 = arith.constant 0 : index
    %32 = vector.load %arg10[%c0_19, %c0_20] : memref<1x16xf32, #tpu.memory_space<vmem>>, vector<1x16xf32>
    %33 = vector.broadcast %32 : vector<1x16xf32> to vector<16x16xf32>
    %34 = arith.addf %31, %33 : vector<16x16xf32>
    %cst_21 = arith.constant 0.000000e+00 : f32
    %35 = vector.broadcast %cst_21 : f32 to vector<16x16xf32>
    %36 = arith.maximumf %34, %35 : vector<16x16xf32>
    %c0_22 = arith.constant 0 : index
    %c0_23 = arith.constant 0 : index
    %37 = vector.load %arg11[%c0_22, %c0_23] : memref<16x1xf32, #tpu.memory_space<vmem>>, vector<16x1xf32>
    %cst_24 = arith.constant dense<0.000000e+00> : vector<16x1xf32>
    %38 = tpu.matmul %36, %37, %cst_24 {dimension_numbers = #tpu.dot_dimension_numbers<[1], [0], [0], [1], [0, 0, 1, 1], [], []>} : vector<16x16xf32>, vector<16x1xf32>, vector<16x1xf32> -> vector<16x1xf32>
    %c0_25 = arith.constant 0 : index
    %c0_26 = arith.constant 0 : index
    %39 = memref.load %arg12[%c0_25, %c0_26] : memref<1x1xf32, #tpu.memory_space<smem>>
    %40 = vector.broadcast %39 : f32 to vector<16x1xf32>
    %41 = arith.addf %38, %40 : vector<16x1xf32>
    %42 = math.exp %41 : vector<16x1xf32>
    %c0_27 = arith.constant 0 : index
    %c0_28 = arith.constant 0 : index
    %43 = vector.load %arg8[%c0_27, %c0_28] : memref<2x32xf32, #tpu.memory_space<vmem>>, vector<2x32xf32>
    %cst_29 = arith.constant dense<0.000000e+00> : vector<16x32xf32>
    %44 = tpu.matmul %28, %43, %cst_29 {dimension_numbers = #tpu.dot_dimension_numbers<[1], [0], [0], [1], [0, 0, 1, 1], [], []>} : vector<16x2xf32>, vector<2x32xf32>, vector<16x32xf32> -> vector<16x32xf32>
    %45 = arith.mulf %17, %44 : vector<16x32xf32>
    %46 = vector.broadcast %42 : vector<16x1xf32> to vector<16x32xf32>
    %47 = arith.mulf %17, %46 : vector<16x32xf32>
    %48 = tpu.concatenate %45, %47 in 1 : vector<16x32xf32>, vector<16x32xf32> -> vector<16x64xf32>
    %49 = tpu.concatenate %28, %42 in 1 : vector<16x2xf32>, vector<16x1xf32> -> vector<16x3xf32>
    %c0_30 = arith.constant 0 : index
    %c0_31 = arith.constant 0 : index
    %50 = vector.load %arg18[%c0_30, %c0_31] : memref<16x64xf32, #tpu.memory_space<vmem>>, vector<16x64xf32>
    %51 = arith.truncf %48 : vector<16x64xf32> to vector<16x64xbf16>
    %cst_32 = arith.constant dense<0.000000e+00> : vector<16x64xf32>
    %52 = tpu.matmul %15, %51, %cst_32 {dimension_numbers = #tpu.dot_dimension_numbers<[0], [0], [1], [1], [0, 1, 1, 1], [], []>} : vector<16x16xbf16>, vector<16x64xbf16>, vector<16x64xf32> -> vector<16x64xf32>
    %53 = arith.addf %50, %52 : vector<16x64xf32>
    %c0_33 = arith.constant 0 : index
    %c0_34 = arith.constant 0 : index
    %54 = vector.load %arg18[%c0_33, %c0_34] : memref<16x64xf32, #tpu.memory_space<vmem>>, vector<16x64xf32>
    tpu.vector_store %arg18[%c0_33, %c0_34], %53 {strides = array<i32>} : memref<16x64xf32, #tpu.memory_space<vmem>>, vector<16x64xf32>,
    %c0_35 = arith.constant 0 : index
    %c0_36 = arith.constant 0 : index
    %55 = vector.load %arg19[%c0_35, %c0_36] : memref<16x3xf32, #tpu.memory_space<vmem>>, vector<16x3xf32>
    %56 = arith.truncf %49 : vector<16x3xf32> to vector<16x3xbf16>
    %cst_37 = arith.constant dense<0.000000e+00> : vector<16x3xf32>
    %57 = tpu.matmul %15, %56, %cst_37 {dimension_numbers = #tpu.dot_dimension_numbers<[0], [0], [1], [1], [0, 1, 1, 1], [], []>} : vector<16x16xbf16>, vector<16x3xbf16>, vector<16x3xf32> -> vector<16x3xf32>
    %58 = arith.addf %55, %57 : vector<16x3xf32>
    %c0_38 = arith.constant 0 : index
    %c0_39 = arith.constant 0 : index
    %59 = vector.load %arg19[%c0_38, %c0_39] : memref<16x3xf32, #tpu.memory_space<vmem>>, vector<16x3xf32>
    tpu.vector_store %arg19[%c0_38, %c0_39], %58 {strides = array<i32>} : memref<16x3xf32, #tpu.memory_space<vmem>>, vector<16x3xf32>,
    %c1_i32 = arith.constant 1 : i32
    %60 = arith.cmpi eq, %arg0, %c1_i32 : i32
    %61 = arith.extui %60 : i1 to i32
    %c0_i32_40 = arith.constant 0 : i32
    %62 = arith.cmpi ne, %61, %c0_i32_40 : i32
    scf.if %62 {
      %c0_41 = arith.constant 0 : index
      %c0_42 = arith.constant 0 : index
      %63 = vector.load %arg18[%c0_41, %c0_42] : memref<16x64xf32, #tpu.memory_space<vmem>>, vector<16x64xf32>
      %c0_43 = arith.constant 0 : index
      %c0_44 = arith.constant 0 : index
      %64 = vector.load %arg19[%c0_43, %c0_44] : memref<16x3xf32, #tpu.memory_space<vmem>>, vector<16x3xf32>
      %65 = vector.extract_strided_slice %64 {offsets = [0, 0], sizes = [16, 2], strides = [1, 1]} : vector<16x3xf32> to vector<16x2xf32>
      %c0_45 = arith.constant 0 : index
      %c0_46 = arith.constant 0 : index
      %66 = vector.load %arg8[%c0_45, %c0_46] : memref<2x32xf32, #tpu.memory_space<vmem>>, vector<2x32xf32>
      %cst_47 = arith.constant dense<0.000000e+00> : vector<16x32xf32>
      %67 = tpu.matmul %65, %66, %cst_47 {dimension_numbers = #tpu.dot_dimension_numbers<[1], [0], [0], [1], [0, 0, 1, 1], [], []>} : vector<16x2xf32>, vector<2x32xf32>, vector<16x32xf32> -> vector<16x32xf32>
      %68 = vector.extract_strided_slice %63 {offsets = [0, 0], sizes = [16, 32], strides = [1, 1]} : vector<16x64xf32> to vector<16x32xf32>
      %cst_48 = arith.constant 9.99999971E-10 : f32
      %69 = vector.broadcast %cst_48 : f32 to vector<16x32xf32>
      %70 = arith.addf %67, %69 : vector<16x32xf32>
      %71 = arith.divf %68, %70 : vector<16x32xf32>
      %72 = vector.extract_strided_slice %63 {offsets = [0, 32], sizes = [16, 32], strides = [1, 1]} : vector<16x64xf32> to vector<16x32xf32>
      %73 = vector.extract_strided_slice %64 {offsets = [0, 2], sizes = [16, 1], strides = [1, 1]} : vector<16x3xf32> to vector<16x1xf32>
      %cst_49 = arith.constant 9.99999971E-10 : f32
      %74 = vector.broadcast %cst_49 : f32 to vector<16x1xf32>
      %75 = arith.addf %73, %74 : vector<16x1xf32>
      %76 = vector.broadcast %75 : vector<16x1xf32> to vector<16x32xf32>
      %77 = arith.divf %72, %76 : vector<16x32xf32>
      %78 = tpu.concatenate %71, %77 in 1 : vector<16x32xf32>, vector<16x32xf32> -> vector<16x64xf32>
      %c0_50 = arith.constant 0 : index
      %c0_51 = arith.constant 0 : index
      %79 = vector.load %arg13[%c0_50, %c0_51] : memref<64x128xf32, #tpu.memory_space<vmem>>, vector<64x128xf32>
      %cst_52 = arith.constant dense<0.000000e+00> : vector<16x128xf32>
      %80 = tpu.matmul %78, %79, %cst_52 {dimension_numbers = #tpu.dot_dimension_numbers<[1], [0], [0], [1], [0, 0, 1, 1], [], []>} : vector<16x64xf32>, vector<64x128xf32>, vector<16x128xf32> -> vector<16x128xf32>
      %c0_53 = arith.constant 0 : index
      %c0_54 = arith.constant 0 : index
      %81 = vector.load %arg14[%c0_53, %c0_54] : memref<1x128xf32, #tpu.memory_space<vmem>>, vector<1x128xf32>
      %82 = vector.broadcast %81 : vector<1x128xf32> to vector<16x128xf32>
      %83 = arith.addf %80, %82 : vector<16x128xf32>
      %cst_55 = arith.constant 0.000000e+00 : f32
      %84 = vector.broadcast %cst_55 : f32 to vector<16x128xf32>
      %85 = arith.maximumf %83, %84 : vector<16x128xf32>
      %c0_56 = arith.constant 0 : index
      %c0_57 = arith.constant 0 : index
      %86 = vector.load %arg15[%c0_56, %c0_57] : memref<16x128xf32, #tpu.memory_space<vmem>>, vector<16x128xf32>
      tpu.vector_store %arg15[%c0_56, %c0_57], %85 {strides = array<i32>} : memref<16x128xf32, #tpu.memory_space<vmem>>, vector<16x128xf32>,
    } else {
    }
    return
  }
  func.func @transform_0(%arg0: i32) -> (i32, i32) {
    %c0_i32 = arith.constant 0 : i32
    %c0_i32_0 = arith.constant 0 : i32
    return %arg0, %c0_i32 : i32, i32
  }
  func.func @transform_1(%arg0: i32) -> (i32, i32) {
    %c0_i32 = arith.constant 0 : i32
    %c0_i32_0 = arith.constant 0 : i32
    return %arg0, %c0_i32 : i32, i32
  }
  func.func @transform_2(%arg0: i32) -> (i32, i32) {
    %c0_i32 = arith.constant 0 : i32
    %c0_i32_0 = arith.constant 0 : i32
    return %arg0, %c0_i32 : i32, i32
  }
  func.func @transform_3(%arg0: i32) -> (i32, i32) {
    %c0_i32 = arith.constant 0 : i32
    %c0_i32_0 = arith.constant 0 : i32
    %c0_i32_1 = arith.constant 0 : i32
    return %c0_i32, %c0_i32_0 : i32, i32
  }
  func.func @transform_4(%arg0: i32) -> (i32, i32) {
    %c0_i32 = arith.constant 0 : i32
    %c0_i32_0 = arith.constant 0 : i32
    %c0_i32_1 = arith.constant 0 : i32
    return %c0_i32, %c0_i32_0 : i32, i32
  }
  func.func @transform_5(%arg0: i32) -> (i32, i32) {
    %c0_i32 = arith.constant 0 : i32
    %c0_i32_0 = arith.constant 0 : i32
    %c0_i32_1 = arith.constant 0 : i32
    return %c0_i32, %c0_i32_0 : i32, i32
  }
  func.func @transform_6(%arg0: i32) -> (i32, i32) {
    %c0_i32 = arith.constant 0 : i32
    %c0_i32_0 = arith.constant 0 : i32
    %c0_i32_1 = arith.constant 0 : i32
    return %c0_i32, %c0_i32_0 : i32, i32
  }
  func.func @transform_7(%arg0: i32) -> (i32, i32) {
    %c0_i32 = arith.constant 0 : i32
    %c0_i32_0 = arith.constant 0 : i32
    %c0_i32_1 = arith.constant 0 : i32
    return %c0_i32, %c0_i32_0 : i32, i32
  }
  func.func @transform_8(%arg0: i32) -> (i32, i32) {
    %c0_i32 = arith.constant 0 : i32
    %c0_i32_0 = arith.constant 0 : i32
    %c0_i32_1 = arith.constant 0 : i32
    return %c0_i32, %c0_i32_0 : i32, i32
  }
  func.func @transform_9(%arg0: i32) -> (i32, i32) {
    %c0_i32 = arith.constant 0 : i32
    %c0_i32_0 = arith.constant 0 : i32
    %c0_i32_1 = arith.constant 0 : i32
    return %c0_i32, %c0_i32_0 : i32, i32
  }
  func.func @transform_10(%arg0: i32) -> (i32, i32) {
    %c0_i32 = arith.constant 0 : i32
    %c0_i32_0 = arith.constant 0 : i32
    %c0_i32_1 = arith.constant 0 : i32
    return %c0_i32, %c0_i32_0 : i32, i32
  }
  func.func @transform_11(%arg0: i32) -> (i32, i32) {
    %c0_i32 = arith.constant 0 : i32
    %c0_i32_0 = arith.constant 0 : i32
    %c0_i32_1 = arith.constant 0 : i32
    return %c0_i32, %c0_i32_0 : i32, i32
  }
  func.func @transform_12(%arg0: i32) -> (i32, i32) {
    %c0_i32 = arith.constant 0 : i32
    %c0_i32_0 = arith.constant 0 : i32
    %c0_i32_1 = arith.constant 0 : i32
    return %c0_i32, %c0_i32_0 : i32, i32
  }
  func.func @transform_13(%arg0: i32) -> (i32, i32) {
    %c0_i32 = arith.constant 0 : i32
    %c0_i32_0 = arith.constant 0 : i32
    %c0_i32_1 = arith.constant 0 : i32
    return %c0_i32, %c0_i32_0 : i32, i32
  }
  func.func @transform_14(%arg0: i32) -> (i32, i32) {
    %c0_i32 = arith.constant 0 : i32
    %c0_i32_0 = arith.constant 0 : i32
    %c0_i32_1 = arith.constant 0 : i32
    return %c0_i32, %c0_i32_0 : i32, i32
  }
}

</mosaic_0001>

<llo_original>
// kernel: tpu_custom_call.1
$region0: #{tpu_custom_call.1}
  #allocation0 [shape = 'u32[]', space=smem, size = 0x4, offset = 0x4, fixed_abs, tag = 'smem constant byte address 0x4 - core index']
  #allocation1 [shape = 'u32[144,128]{1,0:T(1,128)}', space=vmem, size = 0x12000, scoped, tag = 'internal scratch']
  #allocation2 [shape = 'bf16[16,32]{1,0:T(16,128)(2,1)}', space=vmem, size = 0x1000, scoped, tag = 'scratch operand']
  #allocation3 [shape = 'bf16[16,2]{1,0:T(16,128)(2,1)}', space=vmem, size = 0x1000, scoped, tag = 'scratch operand']
  #allocation4 [shape = 'f32[16,64]{1,0:T(8,128)}', space=vmem, size = 0x2000, scoped, tag = 'scratch operand']
  #allocation5 [shape = 'f32[16,3]{1,0:T(8,128)}', space=vmem, size = 0x2000, scoped, tag = 'scratch operand']
  #allocation6 [shape = 'f32[1,1]{1,0:T(1,128)S(6)}', space=smem, size = 0x200, scoped, tag = 'scoped memory for tpu_custom_call.1']
  %s0 = inlined_call_operand.vmem [shape: s32[32,1], index: 0, kind: input, shape index: {}]
  %s1 = inlined_call_operand.vmem [shape: s32[32,1], index: 1, kind: input, shape index: {}]
  %s2 = inlined_call_operand.vmem [shape: f32[32,8], index: 2, kind: input, shape index: {}]
  %s3 = inlined_call_operand.vmem [shape: f32[16,32], index: 3, kind: input, shape index: {}]
  %s4 = inlined_call_operand.vmem [shape: f32[32,32], index: 4, kind: input, shape index: {}]
  %s5 = inlined_call_operand.vmem [shape: f32[32,2], index: 5, kind: input, shape index: {}]
  %s6 = inlined_call_operand.vmem [shape: f32[32,2], index: 6, kind: input, shape index: {}]
  %s7 = inlined_call_operand.vmem [shape: f32[2,32], index: 7, kind: input, shape index: {}]
  %s8 = inlined_call_operand.vmem [shape: f32[8,16], index: 8, kind: input, shape index: {}]
  %s9 = inlined_call_operand.vmem [shape: f32[1,16], index: 9, kind: input, shape index: {}]
  %s10 = inlined_call_operand.vmem [shape: f32[16,1], index: 10, kind: input, shape index: {}]
  %s11 = inlined_call_operand.<no memory space> [shape: f32[1,1], index: 11, kind: input, shape index: {}]
  %s12 = inlined_call_operand.vmem [shape: f32[64,128], index: 12, kind: input, shape index: {}]
  %s13 = inlined_call_operand.vmem [shape: f32[1,128], index: 13, kind: input, shape index: {}]
  %s14 = inlined_call_operand.hbm [shape: f32[16,128], index: 14, kind: output, shape index: {}]
  %s15 = sld [smem:[#allocation0]]
  $region97: #{tpu_custom_call.1} parent=0
    _
  %s17 = ssub.s32 1, %s15
  %s18 = scalar_select 0, %s17, %s15
  %19 = sst [smem:[#allocation6]] %s11
  $region1: #{tpu_custom_call.1} parent=0
    #allocation7 [shape = 'u8[8192]{0}', space=vmem, size = 0x2000, scoped, tag = 'output window, operand 0, single buffered']
    #allocation8 [shape = 's32[2]{0}', space=sflag, size = 0x8, scoped, tag = 'scoped memory for tpu_custom_call.1']
    %20 = vsyncpa [#allocation8], 0
    loop: start=0, step=1, limit=4
    $region2: #{tpu_custom_call.1} parent=1 // loop_pre_header
      _
    $region3: #{tpu_custom_call.1} parent=1 // loop_header
      %s22 = sphi 0, %s26
      %p23 = scmp.ge.s32.totalorder %s22, 4
      %s32 = sphi 0, %s34
      %s35 = sphi 0, %s32
      %s36 = sphi 0, %s35
      %s52 = sphi 0, %s36
      %s58 = sphi 0, %s60
      %s61 = sphi 0, %s58
      %s62 = sphi 0, %s61
      %s78 = sphi 0, %s62
      %s84 = sphi 0, %s86
      %s87 = sphi 0, %s84
      %s88 = sphi 0, %s87
      %s104 = sphi 0, %s88
      %s108 = sphi 0, %s108
      %s110 = sphi 0, %s108
      %s111 = sphi 0, %s110
      %s125 = sphi 0, %s111
      %s129 = sphi 0, %s129
      %s131 = sphi 0, %s129
      %s132 = sphi 0, %s131
      %s146 = sphi 0, %s132
      %s150 = sphi 0, %s150
      %s152 = sphi 0, %s150
      %s153 = sphi 0, %s152
      %s167 = sphi 0, %s153
      %s171 = sphi 0, %s171
      %s173 = sphi 0, %s171
      %s174 = sphi 0, %s173
      %s188 = sphi 0, %s174
      %s192 = sphi 0, %s192
      %s194 = sphi 0, %s192
      %s195 = sphi 0, %s194
      %s209 = sphi 0, %s195
      %s213 = sphi 0, %s213
      %s215 = sphi 0, %s213
      %s216 = sphi 0, %s215
      %s230 = sphi 0, %s216
      %s234 = sphi 0, %s234
      %s236 = sphi 0, %s234
      %s237 = sphi 0, %s236
      %s251 = sphi 0, %s237
      %s255 = sphi 0, %s255
      %s257 = sphi 0, %s255
      %s258 = sphi 0, %s257
      %s272 = sphi 0, %s258
      %s276 = sphi 0, %s276
      %s278 = sphi 0, %s276
      %s279 = sphi 0, %s278
      %s293 = sphi 0, %s279
      %s297 = sphi 0, %s297
      %s299 = sphi 0, %s297
      %s300 = sphi 0, %s299
      %s314 = sphi 0, %s300
      %s318 = sphi 0, %s318
      %s320 = sphi 0, %s318
      %s321 = sphi 0, %s320
      %s335 = sphi 0, %s321
      %s339 = sphi 0, %s339
      %s341 = sphi 0, %s339
      %s342 = sphi 0, %s341
      %s356 = sphi 0, %s342
    $region4: #{tpu_custom_call.1} parent=1 // loop_header_branch
      %25 = sbr.rel (%p23) target = $region8
    $region5: #{tpu_custom_call.1} parent=1 // loop_body
      %s27 = ssub.s32 %s22, 1
      %s28 = ssub.s32 %s22, 2
      %s29 = sadd.s32 %s22, 1
      %s30 = ssub.s32 %s22, %s29
      %p31 = scmp.eq.s32.totalorder %s30, 0
      %s33 = sadd.s32 %s32, 1
      %s34 = scalar_select %p31, %s32, %s33
      %p37 = pneg %p31
      %p38 = scmp.eq.s32.totalorder %s22, 1
      %p39 = por %p37, %p38
      %p40 = scmp.ne.s32.totalorder %s32, %s35
      %p41 = scmp.eq.s32.totalorder %s22, 0
      %p42 = por %p40, %p41
      %p43 = scmp.ne.s32.totalorder %s32, %s35
      %p44 = scmp.eq.s32.totalorder %s27, 1
      %p45 = por %p43, %p44
      %p46 = scmp.ne.s32.totalorder %s35, %s36
      %p47 = scmp.eq.s32.totalorder %s27, 0
      %p48 = por %p46, %p47
      %p49 = scmp.ne.s32.totalorder %s35, %s36
      %p50 = scmp.eq.s32.totalorder %s28, 1
      %p51 = por %p49, %p50
      %p53 = scmp.ne.s32.totalorder %s36, %s52
      %p54 = scmp.eq.s32.totalorder %s28, 0
      %p55 = por %p53, %p54
      %s56 = ssub.s32 %s22, %s29
      %p57 = scmp.eq.s32.totalorder %s56, 0
      %s59 = sadd.s32 %s58, 1
      %s60 = scalar_select %p57, %s58, %s59
      %p63 = pneg %p57
      %p64 = scmp.eq.s32.totalorder %s22, 1
      %p65 = por %p63, %p64
      %p66 = scmp.ne.s32.totalorder %s58, %s61
      %p67 = scmp.eq.s32.totalorder %s22, 0
      %p68 = por %p66, %p67
      %p69 = scmp.ne.s32.totalorder %s58, %s61
      %p70 = scmp.eq.s32.totalorder %s27, 1
      %p71 = por %p69, %p70
      %p72 = scmp.ne.s32.totalorder %s61, %s62
      %p73 = scmp.eq.s32.totalorder %s27, 0
      %p74 = por %p72, %p73
      %p75 = scmp.ne.s32.totalorder %s61, %s62
      %p76 = scmp.eq.s32.totalorder %s28, 1
      %p77 = por %p75, %p76
      %p79 = scmp.ne.s32.totalorder %s62, %s78
      %p80 = scmp.eq.s32.totalorder %s28, 0
      %p81 = por %p79, %p80
      %s82 = ssub.s32 %s22, %s29
      %p83 = scmp.eq.s32.totalorder %s82, 0
      %s85 = sadd.s32 %s84, 1
      %s86 = scalar_select %p83, %s84, %s85
      %p89 = pneg %p83
      %p90 = scmp.eq.s32.totalorder %s22, 1
      %p91 = por %p89, %p90
      %p92 = scmp.ne.s32.totalorder %s84, %s87
      %p93 = scmp.eq.s32.totalorder %s22, 0
      %p94 = por %p92, %p93
      %p95 = scmp.ne.s32.totalorder %s84, %s87
      %p96 = scmp.eq.s32.totalorder %s27, 1
      %p97 = por %p95, %p96
      %p98 = scmp.ne.s32.totalorder %s87, %s88
      %p99 = scmp.eq.s32.totalorder %s27, 0
      %p100 = por %p98, %p99
      %p101 = scmp.ne.s32.totalorder %s87, %s88
      %p102 = scmp.eq.s32.totalorder %s28, 1
      %p103 = por %p101, %p102
      %p105 = scmp.ne.s32.totalorder %s88, %s104
      %p106 = scmp.eq.s32.totalorder %s28, 0
      %p107 = por %p105, %p106
      %s109 = sadd.s32 %s108, 1
      %p112 = scmp.eq.s32.totalorder %s22, 1
      %p113 = scmp.ne.s32.totalorder %s108, %s110
      %p114 = scmp.eq.s32.totalorder %s22, 0
      %p115 = por %p113, %p114
      %p116 = scmp.ne.s32.totalorder %s108, %s110
      %p117 = scmp.eq.s32.totalorder %s27, 1
      %p118 = por %p116, %p117
      %p119 = scmp.ne.s32.totalorder %s110, %s111
      %p120 = scmp.eq.s32.totalorder %s27, 0
      %p121 = por %p119, %p120
      %p122 = scmp.ne.s32.totalorder %s110, %s111
      %p123 = scmp.eq.s32.totalorder %s28, 1
      %p124 = por %p122, %p123
      %p126 = scmp.ne.s32.totalorder %s111, %s125
      %p127 = scmp.eq.s32.totalorder %s28, 0
      %p128 = por %p126, %p127
      %s130 = sadd.s32 %s129, 1
      %p133 = scmp.eq.s32.totalorder %s22, 1
      %p134 = scmp.ne.s32.totalorder %s129, %s131
      %p135 = scmp.eq.s32.totalorder %s22, 0
      %p136 = por %p134, %p135
      %p137 = scmp.ne.s32.totalorder %s129, %s131
      %p138 = scmp.eq.s32.totalorder %s27, 1
      %p139 = por %p137, %p138
      %p140 = scmp.ne.s32.totalorder %s131, %s132
      %p141 = scmp.eq.s32.totalorder %s27, 0
      %p142 = por %p140, %p141
      %p143 = scmp.ne.s32.totalorder %s131, %s132
      %p144 = scmp.eq.s32.totalorder %s28, 1
      %p145 = por %p143, %p144
      %p147 = scmp.ne.s32.totalorder %s132, %s146
      %p148 = scmp.eq.s32.totalorder %s28, 0
      %p149 = por %p147, %p148
      %s151 = sadd.s32 %s150, 1
      %p154 = scmp.eq.s32.totalorder %s22, 1
      %p155 = scmp.ne.s32.totalorder %s150, %s152
      %p156 = scmp.eq.s32.totalorder %s22, 0
      %p157 = por %p155, %p156
      %p158 = scmp.ne.s32.totalorder %s150, %s152
      %p159 = scmp.eq.s32.totalorder %s27, 1
      %p160 = por %p158, %p159
      %p161 = scmp.ne.s32.totalorder %s152, %s153
      %p162 = scmp.eq.s32.totalorder %s27, 0
      %p163 = por %p161, %p162
      %p164 = scmp.ne.s32.totalorder %s152, %s153
      %p165 = scmp.eq.s32.totalorder %s28, 1
      %p166 = por %p164, %p165
      %p168 = scmp.ne.s32.totalorder %s153, %s167
      %p169 = scmp.eq.s32.totalorder %s28, 0
      %p170 = por %p168, %p169
      %s172 = sadd.s32 %s171, 1
      %p175 = scmp.eq.s32.totalorder %s22, 1
      %p176 = scmp.ne.s32.totalorder %s171, %s173
      %p177 = scmp.eq.s32.totalorder %s22, 0
      %p178 = por %p176, %p177
      %p179 = scmp.ne.s32.totalorder %s171, %s173
      %p180 = scmp.eq.s32.totalorder %s27, 1
      %p181 = por %p179, %p180
      %p182 = scmp.ne.s32.totalorder %s173, %s174
      %p183 = scmp.eq.s32.totalorder %s27, 0
      %p184 = por %p182, %p183
      %p185 = scmp.ne.s32.totalorder %s173, %s174
      %p186 = scmp.eq.s32.totalorder %s28, 1
      %p187 = por %p185, %p186
      %p189 = scmp.ne.s32.totalorder %s174, %s188
      %p190 = scmp.eq.s32.totalorder %s28, 0
      %p191 = por %p189, %p190
      %s193 = sadd.s32 %s192, 1
      %p196 = scmp.eq.s32.totalorder %s22, 1
      %p197 = scmp.ne.s32.totalorder %s192, %s194
      %p198 = scmp.eq.s32.totalorder %s22, 0
      %p199 = por %p197, %p198
      %p200 = scmp.ne.s32.totalorder %s192, %s194
      %p201 = scmp.eq.s32.totalorder %s27, 1
      %p202 = por %p200, %p201
      %p203 = scmp.ne.s32.totalorder %s194, %s195
      %p204 = scmp.eq.s32.totalorder %s27, 0
      %p205 = por %p203, %p204
      %p206 = scmp.ne.s32.totalorder %s194, %s195
      %p207 = scmp.eq.s32.totalorder %s28, 1
      %p208 = por %p206, %p207
      %p210 = scmp.ne.s32.totalorder %s195, %s209
      %p211 = scmp.eq.s32.totalorder %s28, 0
      %p212 = por %p210, %p211
      %s214 = sadd.s32 %s213, 1
      %p217 = scmp.eq.s32.totalorder %s22, 1
      %p218 = scmp.ne.s32.totalorder %s213, %s215
      %p219 = scmp.eq.s32.totalorder %s22, 0
      %p220 = por %p218, %p219
      %p221 = scmp.ne.s32.totalorder %s213, %s215
      %p222 = scmp.eq.s32.totalorder %s27, 1
      %p223 = por %p221, %p222
      %p224 = scmp.ne.s32.totalorder %s215, %s216
      %p225 = scmp.eq.s32.totalorder %s27, 0
      %p226 = por %p224, %p225
      %p227 = scmp.ne.s32.totalorder %s215, %s216
      %p228 = scmp.eq.s32.totalorder %s28, 1
      %p229 = por %p227, %p228
      %p231 = scmp.ne.s32.totalorder %s216, %s230
      %p232 = scmp.eq.s32.totalorder %s28, 0
      %p233 = por %p231, %p232
      %s235 = sadd.s32 %s234, 1
      %p238 = scmp.eq.s32.totalorder %s22, 1
      %p239 = scmp.ne.s32.totalorder %s234, %s236
      %p240 = scmp.eq.s32.totalorder %s22, 0
      %p241 = por %p239, %p240
      %p242 = scmp.ne.s32.totalorder %s234, %s236
      %p243 = scmp.eq.s32.totalorder %s27, 1
      %p244 = por %p242, %p243
      %p245 = scmp.ne.s32.totalorder %s236, %s237
      %p246 = scmp.eq.s32.totalorder %s27, 0
      %p247 = por %p245, %p246
      %p248 = scmp.ne.s32.totalorder %s236, %s237
      %p249 = scmp.eq.s32.totalorder %s28, 1
      %p250 = por %p248, %p249
      %p252 = scmp.ne.s32.totalorder %s237, %s251
      %p253 = scmp.eq.s32.totalorder %s28, 0
      %p254 = por %p252, %p253
      %s256 = sadd.s32 %s255, 1
      %p259 = scmp.eq.s32.totalorder %s22, 1
      %p260 = scmp.ne.s32.totalorder %s255, %s257
      %p261 = scmp.eq.s32.totalorder %s22, 0
      %p262 = por %p260, %p261
      %p263 = scmp.ne.s32.totalorder %s255, %s257
      %p264 = scmp.eq.s32.totalorder %s27, 1
      %p265 = por %p263, %p264
      %p266 = scmp.ne.s32.totalorder %s257, %s258
      %p267 = scmp.eq.s32.totalorder %s27, 0
      %p268 = por %p266, %p267
      %p269 = scmp.ne.s32.totalorder %s257, %s258
      %p270 = scmp.eq.s32.totalorder %s28, 1
      %p271 = por %p269, %p270
      %p273 = scmp.ne.s32.totalorder %s258, %s272
      %p274 = scmp.eq.s32.totalorder %s28, 0
      %p275 = por %p273, %p274
      %s277 = sadd.s32 %s276, 1
      %p280 = scmp.eq.s32.totalorder %s22, 1
      %p281 = scmp.ne.s32.totalorder %s276, %s278
      %p282 = scmp.eq.s32.totalorder %s22, 0
      %p283 = por %p281, %p282
      %p284 = scmp.ne.s32.totalorder %s276, %s278
      %p285 = scmp.eq.s32.totalorder %s27, 1
      %p286 = por %p284, %p285
      %p287 = scmp.ne.s32.totalorder %s278, %s279
      %p288 = scmp.eq.s32.totalorder %s27, 0
      %p289 = por %p287, %p288
      %p290 = scmp.ne.s32.totalorder %s278, %s279
      %p291 = scmp.eq.s32.totalorder %s28, 1
      %p292 = por %p290, %p291
      %p294 = scmp.ne.s32.totalorder %s279, %s293
      %p295 = scmp.eq.s32.totalorder %s28, 0
      %p296 = por %p294, %p295
      %s298 = sadd.s32 %s297, 1
      %p301 = scmp.eq.s32.totalorder %s22, 1
      %p302 = scmp.ne.s32.totalorder %s297, %s299
      %p303 = scmp.eq.s32.totalorder %s22, 0
      %p304 = por %p302, %p303
      %p305 = scmp.ne.s32.totalorder %s297, %s299
      %p306 = scmp.eq.s32.totalorder %s27, 1
      %p307 = por %p305, %p306
      %p308 = scmp.ne.s32.totalorder %s299, %s300
      %p309 = scmp.eq.s32.totalorder %s27, 0
      %p310 = por %p308, %p309
      %p311 = scmp.ne.s32.totalorder %s299, %s300
      %p312 = scmp.eq.s32.totalorder %s28, 1
      %p313 = por %p311, %p312
      %p315 = scmp.ne.s32.totalorder %s300, %s314
      %p316 = scmp.eq.s32.totalorder %s28, 0
      %p317 = por %p315, %p316
      %s319 = sadd.s32 %s318, 1
      %p322 = scmp.eq.s32.totalorder %s22, 1
      %p323 = scmp.ne.s32.totalorder %s318, %s320
      %p324 = scmp.eq.s32.totalorder %s22, 0
      %p325 = por %p323, %p324
      %p326 = scmp.ne.s32.totalorder %s318, %s320
      %p327 = scmp.eq.s32.totalorder %s27, 1
      %p328 = por %p326, %p327
      %p329 = scmp.ne.s32.totalorder %s320, %s321
      %p330 = scmp.eq.s32.totalorder %s27, 0
      %p331 = por %p329, %p330
      %p332 = scmp.ne.s32.totalorder %s320, %s321
      %p333 = scmp.eq.s32.totalorder %s28, 1
      %p334 = por %p332, %p333
      %p336 = scmp.ne.s32.totalorder %s321, %s335
      %p337 = scmp.eq.s32.totalorder %s28, 0
      %p338 = por %p336, %p337
      %s340 = sadd.s32 %s339, 1
      %p343 = scmp.eq.s32.totalorder %s22, 1
      %p344 = scmp.ne.s32.totalorder %s339, %s341
      %p345 = scmp.eq.s32.totalorder %s22, 0
      %p346 = por %p344, %p345
      %p347 = scmp.ne.s32.totalorder %s339, %s341
      %p348 = scmp.eq.s32.totalorder %s27, 1
      %p349 = por %p347, %p348
      %p350 = scmp.ne.s32.totalorder %s341, %s342
      %p351 = scmp.eq.s32.totalorder %s27, 0
      %p352 = por %p350, %p351
      %p353 = scmp.ne.s32.totalorder %s341, %s342
      %p354 = scmp.eq.s32.totalorder %s28, 1
      %p355 = por %p353, %p354
      %p357 = scmp.ne.s32.totalorder %s342, %s356
      %p358 = scmp.eq.s32.totalorder %s28, 0
      %p359 = por %p357, %p358
      %p360 = scmp.le.s32.totalorder 1, %s22
      %p361 = scmp.lt.s32.totalorder %s22, 3
      %p362 = pnand %p360, %p361
      %p363 = pneg %p362
      // Predicated region
      $region9: #{tpu_custom_call.1} parent=5 // pred_check
        _
      $region10: #{tpu_custom_call.1} parent=5 // pred_check_branch
        %365 = sbr.rel (%p362) target = $region12
      $region11: #{tpu_custom_call.1} parent=5 // pred_region
        %s366 = ssub.s32 %s22, 1
        // Predicated region
        $region13: #{tpu_custom_call.1} parent=11 // pred_check
          %p367 = pneg %p121
        $region14: #{tpu_custom_call.1} parent=11 // pred_check_branch
          %369 = sbr.rel (%p367) target = $region16
        $region15: #{tpu_custom_call.1} parent=11 // pred_region
          _
        $region16: #{tpu_custom_call.1} parent=11 // pred_fallthru
          _
        // Predicated region
        $region17: #{tpu_custom_call.1} parent=11 // pred_check
          %p370 = pneg %p142
        $region18: #{tpu_custom_call.1} parent=11 // pred_check_branch
          %372 = sbr.rel (%p370) target = $region20
        $region19: #{tpu_custom_call.1} parent=11 // pred_region
          _
        $region20: #{tpu_custom_call.1} parent=11 // pred_fallthru
          _
        // Predicated region
        $region21: #{tpu_custom_call.1} parent=11 // pred_check
          %p373 = pneg %p163
        $region22: #{tpu_custom_call.1} parent=11 // pred_check_branch
          %375 = sbr.rel (%p373) target = $region24
        $region23: #{tpu_custom_call.1} parent=11 // pred_region
          _
        $region24: #{tpu_custom_call.1} parent=11 // pred_fallthru
          _
        // Predicated region
        $region25: #{tpu_custom_call.1} parent=11 // pred_check
          %p376 = pneg %p184
        $region26: #{tpu_custom_call.1} parent=11 // pred_check_branch
          %378 = sbr.rel (%p376) target = $region28
        $region27: #{tpu_custom_call.1} parent=11 // pred_region
          _
        $region28: #{tpu_custom_call.1} parent=11 // pred_fallthru
          _
        // Predicated region
        $region29: #{tpu_custom_call.1} parent=11 // pred_check
          %p379 = pneg %p205
        $region30: #{tpu_custom_call.1} parent=11 // pred_check_branch
          %381 = sbr.rel (%p379) target = $region32
        $region31: #{tpu_custom_call.1} parent=11 // pred_region
          _
        $region32: #{tpu_custom_call.1} parent=11 // pred_fallthru
          _
        // Predicated region
        $region33: #{tpu_custom_call.1} parent=11 // pred_check
          %p382 = pneg %p226
        $region34: #{tpu_custom_call.1} parent=11 // pred_check_branch
          %384 = sbr.rel (%p382) target = $region36
        $region35: #{tpu_custom_call.1} parent=11 // pred_region
          _
        $region36: #{tpu_custom_call.1} parent=11 // pred_fallthru
          _
        // Predicated region
        $region37: #{tpu_custom_call.1} parent=11 // pred_check
          %p385 = pneg %p247
        $region38: #{tpu_custom_call.1} parent=11 // pred_check_branch
          %387 = sbr.rel (%p385) target = $region40
        $region39: #{tpu_custom_call.1} parent=11 // pred_region
          _
        $region40: #{tpu_custom_call.1} parent=11 // pred_fallthru
          _
        // Predicated region
        $region41: #{tpu_custom_call.1} parent=11 // pred_check
          %p388 = pneg %p268
        $region42: #{tpu_custom_call.1} parent=11 // pred_check_branch
          %390 = sbr.rel (%p388) target = $region44
        $region43: #{tpu_custom_call.1} parent=11 // pred_region
          _
        $region44: #{tpu_custom_call.1} parent=11 // pred_fallthru
          _
        // Predicated region
        $region45: #{tpu_custom_call.1} parent=11 // pred_check
          %p391 = pneg %p289
        $region46: #{tpu_custom_call.1} parent=11 // pred_check_branch
          %393 = sbr.rel (%p391) target = $region48
        $region47: #{tpu_custom_call.1} parent=11 // pred_region
          _
        $region48: #{tpu_custom_call.1} parent=11 // pred_fallthru
          _
        // Predicated region
        $region49: #{tpu_custom_call.1} parent=11 // pred_check
          %p394 = pneg %p310
        $region50: #{tpu_custom_call.1} parent=11 // pred_check_branch
          %396 = sbr.rel (%p394) target = $region52
        $region51: #{tpu_custom_call.1} parent=11 // pred_region
          _
        $region52: #{tpu_custom_call.1} parent=11 // pred_fallthru
          _
        // Predicated region
        $region53: #{tpu_custom_call.1} parent=11 // pred_check
          %p397 = pneg %p331
        $region54: #{tpu_custom_call.1} parent=11 // pred_check_branch
          %399 = sbr.rel (%p397) target = $region56
        $region55: #{tpu_custom_call.1} parent=11 // pred_region
          _
        $region56: #{tpu_custom_call.1} parent=11 // pred_fallthru
          _
      $region12: #{tpu_custom_call.1} parent=5 // pred_fallthru
        _
      %p400 = scmp.lt.s32.totalorder %s22, 2
      // Predicated region
      $region57: #{tpu_custom_call.1} parent=5 // pred_check
        %p401 = pneg %p400
      $region58: #{tpu_custom_call.1} parent=5 // pred_check_branch
        %403 = sbr.rel (%p401) target = $region60
      $region59: #{tpu_custom_call.1} parent=5 // pred_region
        // Predicated region
        $region61: #{tpu_custom_call.1} parent=59 // pred_check
          %p404 = pneg %p42
        $region62: #{tpu_custom_call.1} parent=59 // pred_check_branch
          %406 = sbr.rel (%p404) target = $region64
        $region63: #{tpu_custom_call.1} parent=59 // pred_region
          %s407 = smul.u32 2, %s22
          %p408 = scmp.lt.s32.totalorder %s407, 3
          %s409 = scalar_select %p408, %s407, 3
          %s410 = smul.addr %s409, 8
          %s411 = scalar_lea.vmem %s0, %s410
          %s412 = smul.u32 2, %s22
        $region64: #{tpu_custom_call.1} parent=59 // pred_fallthru
          _
        // Predicated region
        $region65: #{tpu_custom_call.1} parent=59 // pred_check
          %p413 = pneg %p68
        $region66: #{tpu_custom_call.1} parent=59 // pred_check_branch
          %415 = sbr.rel (%p413) target = $region68
        $region67: #{tpu_custom_call.1} parent=59 // pred_region
          %s416 = smul.u32 2, %s22
          %p417 = scmp.lt.s32.totalorder %s416, 3
          %s418 = scalar_select %p417, %s416, 3
          %s419 = smul.addr %s418, 8
          %s420 = scalar_lea.vmem %s1, %s419
          %s421 = smul.u32 2, %s22
        $region68: #{tpu_custom_call.1} parent=59 // pred_fallthru
          _
        // Predicated region
        $region69: #{tpu_custom_call.1} parent=59 // pred_check
          %p422 = pneg %p94
        $region70: #{tpu_custom_call.1} parent=59 // pred_check_branch
          %424 = sbr.rel (%p422) target = $region72
        $region71: #{tpu_custom_call.1} parent=59 // pred_region
          %s425 = smul.u32 2, %s22
          %p426 = scmp.lt.s32.totalorder %s425, 3
          %s427 = scalar_select %p426, %s425, 3
          %s428 = smul.addr %s427, 8
          %s429 = scalar_lea.vmem %s2, %s428
          %s430 = smul.u32 2, %s22
        $region72: #{tpu_custom_call.1} parent=59 // pred_fallthru
          _
      $region60: #{tpu_custom_call.1} parent=5 // pred_fallthru
        _
      %p431 = scmp.le.s32.totalorder 1, %s22
      %p432 = scmp.lt.s32.totalorder %s22, 3
      %p433 = pnand %p431, %p432
      %p434 = pneg %p433
      // Predicated region
      $region73: #{tpu_custom_call.1} parent=5 // pred_check
        _
      $region74: #{tpu_custom_call.1} parent=5 // pred_check_branch
        %436 = sbr.rel (%p433) target = $region76
      $region75: #{tpu_custom_call.1} parent=5 // pred_region
        %s437 = ssub.s32 %s22, 1
        %s438 = smul.u32 2, %s27
        %p439 = scmp.lt.s32.totalorder %s438, 3
        %s440 = scalar_select %p439, %s438, 3
        %s441 = smul.addr %s440, 8
        %s442 = scalar_lea.vmem %s0, %s441
        %p443 = pneg %p48
        %p444 = pneg %p45
        %s445 = smul.u32 2, %s27
        %p446 = scmp.lt.s32.totalorder %s445, 3
        %s447 = scalar_select %p446, %s445, 3
        %s448 = smul.addr %s447, 8
        %s449 = scalar_lea.vmem %s1, %s448
        %p450 = pneg %p74
        %p451 = pneg %p71
        %s452 = smul.u32 2, %s27
        %p453 = scmp.lt.s32.totalorder %s452, 3
        %s454 = scalar_select %p453, %s452, 3
        %s455 = smul.addr %s454, 8
        %s456 = scalar_lea.vmem %s2, %s455
        %p457 = pneg %p100
        %p458 = pneg %p97
        %p459 = pneg %p121
        %p460 = pneg %p118
        %p461 = pneg %p142
        %p462 = pneg %p139
        %p463 = pneg %p163
        %p464 = pneg %p160
        %p465 = pneg %p184
        %p466 = pneg %p181
        %p467 = pneg %p205
        %p468 = pneg %p202
        %p469 = pneg %p226
        %p470 = pneg %p223
        %p471 = pneg %p247
        %p472 = pneg %p244
        %p473 = pneg %p268
        %p474 = pneg %p265
        %p475 = pneg %p289
        %p476 = pneg %p286
        %p477 = pneg %p310
        %p478 = pneg %p307
        %p479 = pneg %p331
        %p480 = pneg %p328
        %p481 = pneg %p352
        %p482 = pneg %p349
        %s483 = smul.u32 2, %s27
        %p484 = scmp.lt.s32.totalorder %s483, 3
        %s485 = scalar_select %p484, %s483, 3
        %s486 = smul.addr %s485, 8
        %s487 = scalar_lea.vmem %s0, %s486
        %s488 = smul.u32 2, %s27
        %s489 = smul.u32 2, %s27
        %p490 = scmp.lt.s32.totalorder %s489, 3
        %s491 = scalar_select %p490, %s489, 3
        %s492 = smul.addr %s491, 8
        %s493 = scalar_lea.vmem %s1, %s492
        %s494 = smul.u32 2, %s27
        %s495 = smul.u32 2, %s27
        %p496 = scmp.lt.s32.totalorder %s495, 3
        %s497 = scalar_select %p496, %s495, 3
        %s498 = smul.addr %s497, 8
        %s499 = scalar_lea.vmem %s2, %s498
        %s500 = smul.u32 2, %s27
        %p502 = scmp.eq.s32.totalorder %s27, 0
        // Predicated region
        $region77: #{tpu_custom_call.1} parent=75 // pred_check
          %p503 = pneg %p502
        $region78: #{tpu_custom_call.1} parent=75 // pred_check_branch
          %505 = sbr.rel (%p503) target = $region80
        $region79: #{tpu_custom_call.1} parent=75 // pred_region
          %v506 = vld [vmem:[%s3] sm:$0xff]
          %v507 = vld [vmem:[%s3 + $0x8] sm:$0xff]
          %v508 = vld [vmem:[%s4] sm:$0xff]
          %v509 = vld [vmem:[%s4 + $0x8] sm:$0xff]
          %v510 = vld [vmem:[%s4 + $0x10] sm:$0xff]
          %v511 = vld [vmem:[%s4 + $0x18] sm:$0xff]
          %vm512 = vcmask 261120
          %v514 = vsel %vm512, %v506, 0
          %v517 = vsel %vm512, %v507, 0
          %519 = vmatprep.subr.mxu0 0.0
          %520 = vmatpush1.msra.mxu0 %v508
          %521 = vmatprep.subr.mxu0 0.0
          %522 = vmatpush1.msra.mxu0 %v509
          %523 = vmatprep.subr.mxu0 0.0
          %524 = vmatpush1.msra.mxu0 %v510
          %525 = vmatprep.subr.mxu0 0.0
          %526 = vmatpush1.msra.mxu0 %v511
          %527 = vmatprep.subr.mxu0 0.0
          %528 = vmatpush1.msra.mxu0 0.0
          %529 = vmatprep.subr.mxu0 0.0
          %530 = vmatpush1.msra.mxu0 0.0
          %531 = vmatprep.subr.mxu0 0.0
          %532 = vmatpush1.msra.mxu0 0.0
          %533 = vmatprep.subr.mxu0 0.0
          %534 = vmatpush1.msra.mxu0 0.0
          %535 = vmatprep.subr.mxu0 0.0
          %536 = vmatpush1.msra.mxu0 0.0
          %537 = vmatprep.subr.mxu0 0.0
          %538 = vmatpush1.msra.mxu0 0.0
          %539 = vmatprep.subr.mxu0 0.0
          %540 = vmatpush1.msra.mxu0 0.0
          %541 = vmatprep.subr.mxu0 0.0
          %542 = vmatpush1.msra.mxu0 0.0
          %543 = vmatprep.subr.mxu0 0.0
          %544 = vmatpush1.msra.mxu0 0.0
          %545 = vmatprep.subr.mxu0 0.0
          %546 = vmatpush1.msra.mxu0 0.0
          %547 = vmatprep.subr.mxu0 0.0
          %548 = vmatpush1.msra.mxu0 0.0
          %549 = vmatprep.subr.mxu0 0.0
          %550 = vmatpush1.msra.mxu0 0.0
          %551 = vmatprep.subr.mxu0 0.0
          %552 = vmatpush1.msra.mxu0 0.0
          %553 = vmatprep.subr.mxu0 0.0
          %554 = vmatpush1.msra.mxu0 0.0
          %555 = vmatprep.subr.mxu0 0.0
          %556 = vmatpush1.msra.mxu0 0.0
          %557 = vmatprep.subr.mxu0 0.0
          %558 = vmatpush1.msra.mxu0 0.0
          %559 = vmatprep.subr.mxu0 0.0
          %560 = vmatpush1.msra.mxu0 0.0
          %561 = vmatprep.subr.mxu0 0.0
          %562 = vmatpush1.msra.mxu0 0.0
          %563 = vmatprep.subr.mxu0 0.0
          %564 = vmatpush1.msra.mxu0 0.0
          %565 = vmatprep.subr.mxu0 0.0
          %566 = vmatpush1.msra.mxu0 0.0
          %567 = vmatprep.subr.mxu0 0.0
          %568 = vmatpush1.msra.mxu0 0.0
          %569 = vmatprep.subr.mxu0 0.0
          %570 = vmatpush1.msra.mxu0 0.0
          %571 = vmatprep.subr.mxu0 0.0
          %572 = vmatpush1.msra.mxu0 0.0
          %573 = vmatprep.subr.mxu0 0.0
          %574 = vmatpush1.msra.mxu0 0.0
          %575 = vmatprep.subr.mxu0 0.0
          %576 = vmatpush1.msra.mxu0 0.0
          %577 = vmatprep.subr.mxu0 0.0
          %578 = vmatpush1.msra.mxu0 0.0
          %579 = vmatprep.subr.mxu0 0.0
          %580 = vmatpush1.msra.mxu0 0.0
          %581 = vmatprep.subr.mxu0 0.0
          %582 = vmatpush1.msra.mxu0 0.0
          %583 = vmatprep.mubr.f32.mxu0 0.0
          %584 = vmatmul.mubr.f32.gmra.mrb[0].mxu0 %v514
          %v585 = vpop.f32.mrb[0].mxu0
          %v586 = vadd.f32 0.0, %v585
          %v587 = vpop.f32.mrb[0].mxu0
          %588 = vmatprep.mubr.f32.mxu0 0.0
          %589 = vmatmul.mubr.f32.gmra.mrb[0].mxu0 %v517
          %v590 = vpop.f32.mrb[0].mxu0
          %v591 = vadd.f32 0.0, %v590
          %v592 = vpop.f32.mrb[0].mxu0
          %593 = vdwg.mxu0
          %v594 = vpack.c.bf16 %v591, %v586
          %595 = vst.msk [vmem:[#allocation2] sm:$0xff] %vm512, %v594
          %v596 = vld [vmem:[%s6] sm:$0xff]
          %v597 = vld [vmem:[%s6 + $0x8] sm:$0xff]
          %v598 = vld [vmem:[%s6 + $0x10] sm:$0xff]
          %v599 = vld [vmem:[%s6 + $0x18] sm:$0xff]
          %v601 = vsel %vm512, %v586, 0
          %v604 = vsel %vm512, %v591, 0
          %606 = vmatprep.subr.mxu0 0.0
          %607 = vmatpush1.msra.mxu0 %v596
          %608 = vmatprep.subr.mxu0 0.0
          %609 = vmatpush1.msra.mxu0 %v597
          %610 = vmatprep.subr.mxu0 0.0
          %611 = vmatpush1.msra.mxu0 %v598
          %612 = vmatprep.subr.mxu0 0.0
          %613 = vmatpush1.msra.mxu0 %v599
          %614 = vmatprep.subr.mxu0 0.0
          %615 = vmatpush1.msra.mxu0 0.0
          %616 = vmatprep.subr.mxu0 0.0
          %617 = vmatpush1.msra.mxu0 0.0
          %618 = vmatprep.subr.mxu0 0.0
          %619 = vmatpush1.msra.mxu0 0.0
          %620 = vmatprep.subr.mxu0 0.0
          %621 = vmatpush1.msra.mxu0 0.0
          %622 = vmatprep.subr.mxu0 0.0
          %623 = vmatpush1.msra.mxu0 0.0
          %624 = vmatprep.subr.mxu0 0.0
          %625 = vmatpush1.msra.mxu0 0.0
          %626 = vmatprep.subr.mxu0 0.0
          %627 = vmatpush1.msra.mxu0 0.0
          %628 = vmatprep.subr.mxu0 0.0
          %629 = vmatpush1.msra.mxu0 0.0
          %630 = vmatprep.subr.mxu0 0.0
          %631 = vmatpush1.msra.mxu0 0.0
          %632 = vmatprep.subr.mxu0 0.0
          %633 = vmatpush1.msra.mxu0 0.0
          %634 = vmatprep.subr.mxu0 0.0
          %635 = vmatpush1.msra.mxu0 0.0
          %636 = vmatprep.subr.mxu0 0.0
          %637 = vmatpush1.msra.mxu0 0.0
          %638 = vmatprep.subr.mxu0 0.0
          %639 = vmatpush1.msra.mxu0 0.0
          %640 = vmatprep.subr.mxu0 0.0
          %641 = vmatpush1.msra.mxu0 0.0
          %642 = vmatprep.subr.mxu0 0.0
          %643 = vmatpush1.msra.mxu0 0.0
          %644 = vmatprep.subr.mxu0 0.0
          %645 = vmatpush1.msra.mxu0 0.0
          %646 = vmatprep.subr.mxu0 0.0
          %647 = vmatpush1.msra.mxu0 0.0
          %648 = vmatprep.subr.mxu0 0.0
          %649 = vmatpush1.msra.mxu0 0.0
          %650 = vmatprep.subr.mxu0 0.0
          %651 = vmatpush1.msra.mxu0 0.0
          %652 = vmatprep.subr.mxu0 0.0
          %653 = vmatpush1.msra.mxu0 0.0
          %654 = vmatprep.subr.mxu0 0.0
          %655 = vmatpush1.msra.mxu0 0.0
          %656 = vmatprep.subr.mxu0 0.0
          %657 = vmatpush1.msra.mxu0 0.0
          %658 = vmatprep.subr.mxu0 0.0
          %659 = vmatpush1.msra.mxu0 0.0
          %660 = vmatprep.subr.mxu0 0.0
          %661 = vmatpush1.msra.mxu0 0.0
          %662 = vmatprep.subr.mxu0 0.0
          %663 = vmatpush1.msra.mxu0 0.0
          %664 = vmatprep.subr.mxu0 0.0
          %665 = vmatpush1.msra.mxu0 0.0
          %666 = vmatprep.subr.mxu0 0.0
          %667 = vmatpush1.msra.mxu0 0.0
          %668 = vmatprep.subr.mxu0 0.0
          %669 = vmatpush1.msra.mxu0 0.0
          %670 = vmatprep.mubr.f32.mxu0 0.0
          %671 = vmatmul.mubr.f32.gmra.mrb[0].mxu0 %v601
          %v672 = vpop.f32.mrb[0].mxu0
          %v673 = vadd.f32 0.0, %v672
          %v674 = vpop.f32.mrb[0].mxu0
          %675 = vmatprep.mubr.f32.mxu0 0.0
          %676 = vmatmul.mubr.f32.gmra.mrb[0].mxu0 %v604
          %v677 = vpop.f32.mrb[0].mxu0
          %v678 = vadd.f32 0.0, %v677
          %v679 = vpop.f32.mrb[0].mxu0
          %680 = vdwg.mxu0
          %v681 = vpack.c.bf16 %v678, %v673
          %vm682 = vcmask 15360
          %683 = vst.msk [vmem:[#allocation3] sm:$0xff] %vm682, %v681
          %vm684 = vcmask 523264
          %685 = vst.msk [vmem:[#allocation4] sm:$0xff] %vm684, 0.0
          %686 = vst.msk [vmem:[#allocation4 + $0x8] sm:$0xff] %vm684, 0.0
          %vm687 = vcmask 23552
          %688 = vst.msk [vmem:[#allocation5] sm:$0xff] %vm687, 0.0
          %689 = vst.msk [vmem:[#allocation5 + $0x8] sm:$0xff] %vm687, 0.0
        $region80: #{tpu_custom_call.1} parent=75 // pred_fallthru
          _
        %v690 = vlaneseq
        %v691 = vand.u32 %v690, 127
        %v692 = vld [vmem:[%s487] sm:$0xff]
        %v693 = vld [vmem:[%s487 + $0x8] sm:$0xff]
        %694 = vset.pattern.permute.xlu0 0
        %695 = vperm.xlu0 %694, %v692
        %v696 = vpop.permute.xlu0 %695
        %697 = vset.pattern.permute.xlu0 0
        %698 = vperm.xlu0 %697, %v693
        %v699 = vpop.permute.xlu0 %698
        %vm700 = vcmp.eq.s32.totalorder %v696, %v691
        %vm701 = vcmp.eq.s32.totalorder %v699, %v691
        %v702 = vsel %vm700, 1, 0
        %v703 = vsel %vm701, 1, 0
        %v704 = vcvt.s32.f32 %v702
        %v705 = vcvt.s32.f32 %v703
        %v706 = vpack.c.bf16 %v705, %v704
        %v707 = vld [vmem:[%s493] sm:$0xff]
        %v708 = vld [vmem:[%s493 + $0x8] sm:$0xff]
        %709 = vset.pattern.permute.xlu0 0
        %710 = vperm.xlu0 %709, %v707
        %v711 = vpop.permute.xlu0 %710
        %712 = vset.pattern.permute.xlu0 0
        %713 = vperm.xlu0 %712, %v708
        %v714 = vpop.permute.xlu0 %713
        %vm715 = vcmp.eq.s32.totalorder %v711, %v691
        %vm716 = vcmp.eq.s32.totalorder %v714, %v691
        %v717 = vsel %vm715, 1, 0
        %v718 = vsel %vm716, 1, 0
        %v719 = vcvt.s32.f32 %v717
        %v720 = vcvt.s32.f32 %v718
        %v721 = vpack.c.bf16 %v720, %v719
        %v722 = vld [vmem:[#allocation2] sm:$0xff]
        %vm723 = vcmask 130048
        %v725 = vsel %vm723, %v706, 0
        %727 = vmatprep.subr.bf16.mxu0 0
        %728 = vmatpush1.bf16.msra.mxu0 %v722
        %729 = vmatprep.subr.bf16.mxu0 0
        %730 = vmatpush1.bf16.msra.mxu0 0
        %731 = vmatprep.subr.bf16.mxu0 0
        %732 = vmatpush1.bf16.msra.mxu0 0
        %733 = vmatprep.subr.bf16.mxu0 0
        %734 = vmatpush1.bf16.msra.mxu0 0
        %735 = vmatprep.subr.bf16.mxu0 0
        %736 = vmatpush1.bf16.msra.mxu0 0
        %737 = vmatprep.subr.bf16.mxu0 0
        %738 = vmatpush1.bf16.msra.mxu0 0
        %739 = vmatprep.subr.bf16.mxu0 0
        %740 = vmatpush1.bf16.msra.mxu0 0
        %741 = vmatprep.subr.bf16.mxu0 0
        %742 = vmatpush1.bf16.msra.mxu0 0
        %743 = vmatprep.subr.bf16.mxu0 0
        %744 = vmatpush1.bf16.msra.mxu0 0
        %745 = vmatprep.subr.bf16.mxu0 0
        %746 = vmatpush1.bf16.msra.mxu0 0
        %747 = vmatprep.subr.bf16.mxu0 0
        %748 = vmatpush1.bf16.msra.mxu0 0
        %749 = vmatprep.subr.bf16.mxu0 0
        %750 = vmatpush1.bf16.msra.mxu0 0
        %751 = vmatprep.subr.bf16.mxu0 0
        %752 = vmatpush1.bf16.msra.mxu0 0
        %753 = vmatprep.subr.bf16.mxu0 0
        %754 = vmatpush1.bf16.msra.mxu0 0
        %755 = vmatprep.subr.bf16.mxu0 0
        %756 = vmatpush1.bf16.msra.mxu0 0
        %757 = vmatprep.subr.bf16.mxu0 0
        %758 = vmatpush1.bf16.msra.mxu0 0
        %759 = vmatprep.mubr.bf16.mxu0 0
        %760 = vmatmul.mubr.bf16.gmra.mrb[0].mxu0 %v725
        %v761 = vpop.f32.mrb[0].mxu0
        %v762 = vadd.f32 0.0, %v761
        %v763 = vpop.f32.mrb[0].mxu0
        %v764 = vpop.f32.mrb[0].mxu0
        %v765 = vadd.f32 0.0, %v764
        %v766 = vpop.f32.mrb[0].mxu0
        %767 = vdwg.mxu0
        %v768 = vld [vmem:[#allocation3] sm:$0xff]
        %v770 = vsel %vm723, %v721, 0
        %772 = vmatprep.subr.bf16.mxu0 0
        %773 = vmatpush1.bf16.msra.mxu0 %v768
        %774 = vmatprep.subr.bf16.mxu0 0
        %775 = vmatpush1.bf16.msra.mxu0 0
        %776 = vmatprep.subr.bf16.mxu0 0
        %777 = vmatpush1.bf16.msra.mxu0 0
        %778 = vmatprep.subr.bf16.mxu0 0
        %779 = vmatpush1.bf16.msra.mxu0 0
        %780 = vmatprep.subr.bf16.mxu0 0
        %781 = vmatpush1.bf16.msra.mxu0 0
        %782 = vmatprep.subr.bf16.mxu0 0
        %783 = vmatpush1.bf16.msra.mxu0 0
        %784 = vmatprep.subr.bf16.mxu0 0
        %785 = vmatpush1.bf16.msra.mxu0 0
        %786 = vmatprep.subr.bf16.mxu0 0
        %787 = vmatpush1.bf16.msra.mxu0 0
        %788 = vmatprep.subr.bf16.mxu0 0
        %789 = vmatpush1.bf16.msra.mxu0 0
        %790 = vmatprep.subr.bf16.mxu0 0
        %791 = vmatpush1.bf16.msra.mxu0 0
        %792 = vmatprep.subr.bf16.mxu0 0
        %793 = vmatpush1.bf16.msra.mxu0 0
        %794 = vmatprep.subr.bf16.mxu0 0
        %795 = vmatpush1.bf16.msra.mxu0 0
        %796 = vmatprep.subr.bf16.mxu0 0
        %797 = vmatpush1.bf16.msra.mxu0 0
        %798 = vmatprep.subr.bf16.mxu0 0
        %799 = vmatpush1.bf16.msra.mxu0 0
        %800 = vmatprep.subr.bf16.mxu0 0
        %801 = vmatpush1.bf16.msra.mxu0 0
        %802 = vmatprep.subr.bf16.mxu0 0
        %803 = vmatpush1.bf16.msra.mxu0 0
        %804 = vmatprep.mubr.bf16.mxu0 0
        %805 = vmatmul.mubr.bf16.gmra.mrb[0].mxu0 %v770
        %v806 = vpop.f32.mrb[0].mxu0
        %v807 = vadd.f32 0.0, %v806
        %v808 = vpop.f32.mrb[0].mxu0
        %v809 = vpop.f32.mrb[0].mxu0
        %v810 = vadd.f32 0.0, %v809
        %v811 = vpop.f32.mrb[0].mxu0
        %812 = vdwg.mxu0
        %v813 = vld [vmem:[%s5] sm:$0xff]
        %v814 = vld [vmem:[%s5 + $0x8] sm:$0xff]
        %v815 = vld [vmem:[%s5 + $0x10] sm:$0xff]
        %v816 = vld [vmem:[%s5 + $0x18] sm:$0xff]
        %vm817 = vcmask 261120
        %v819 = vsel %vm817, %v762, 0
        %v822 = vsel %vm817, %v765, 0
        %824 = vmatprep.subr.mxu0 0.0
        %825 = vmatpush1.msra.mxu0 %v813
        %826 = vmatprep.subr.mxu0 0.0
        %827 = vmatpush1.msra.mxu0 %v814
        %828 = vmatprep.subr.mxu0 0.0
        %829 = vmatpush1.msra.mxu0 %v815
        %830 = vmatprep.subr.mxu0 0.0
        %831 = vmatpush1.msra.mxu0 %v816
        %832 = vmatprep.subr.mxu0 0.0
        %833 = vmatpush1.msra.mxu0 0.0
        %834 = vmatprep.subr.mxu0 0.0
        %835 = vmatpush1.msra.mxu0 0.0
        %836 = vmatprep.subr.mxu0 0.0
        %837 = vmatpush1.msra.mxu0 0.0
        %838 = vmatprep.subr.mxu0 0.0
        %839 = vmatpush1.msra.mxu0 0.0
        %840 = vmatprep.subr.mxu0 0.0
        %841 = vmatpush1.msra.mxu0 0.0
        %842 = vmatprep.subr.mxu0 0.0
        %843 = vmatpush1.msra.mxu0 0.0
        %844 = vmatprep.subr.mxu0 0.0
        %845 = vmatpush1.msra.mxu0 0.0
        %846 = vmatprep.subr.mxu0 0.0
        %847 = vmatpush1.msra.mxu0 0.0
        %848 = vmatprep.subr.mxu0 0.0
        %849 = vmatpush1.msra.mxu0 0.0
        %850 = vmatprep.subr.mxu0 0.0
        %851 = vmatpush1.msra.mxu0 0.0
        %852 = vmatprep.subr.mxu0 0.0
        %853 = vmatpush1.msra.mxu0 0.0
        %854 = vmatprep.subr.mxu0 0.0
        %855 = vmatpush1.msra.mxu0 0.0
        %856 = vmatprep.subr.mxu0 0.0
        %857 = vmatpush1.msra.mxu0 0.0
        %858 = vmatprep.subr.mxu0 0.0
        %859 = vmatpush1.msra.mxu0 0.0
        %860 = vmatprep.subr.mxu0 0.0
        %861 = vmatpush1.msra.mxu0 0.0
        %862 = vmatprep.subr.mxu0 0.0
        %863 = vmatpush1.msra.mxu0 0.0
        %864 = vmatprep.subr.mxu0 0.0
        %865 = vmatpush1.msra.mxu0 0.0
        %866 = vmatprep.subr.mxu0 0.0
        %867 = vmatpush1.msra.mxu0 0.0
        %868 = vmatprep.subr.mxu0 0.0
        %869 = vmatpush1.msra.mxu0 0.0
        %870 = vmatprep.subr.mxu0 0.0
        %871 = vmatpush1.msra.mxu0 0.0
        %872 = vmatprep.subr.mxu0 0.0
        %873 = vmatpush1.msra.mxu0 0.0
        %874 = vmatprep.subr.mxu0 0.0
        %875 = vmatpush1.msra.mxu0 0.0
        %876 = vmatprep.subr.mxu0 0.0
        %877 = vmatpush1.msra.mxu0 0.0
        %878 = vmatprep.subr.mxu0 0.0
        %879 = vmatpush1.msra.mxu0 0.0
        %880 = vmatprep.subr.mxu0 0.0
        %881 = vmatpush1.msra.mxu0 0.0
        %882 = vmatprep.subr.mxu0 0.0
        %883 = vmatpush1.msra.mxu0 0.0
        %884 = vmatprep.subr.mxu0 0.0
        %885 = vmatpush1.msra.mxu0 0.0
        %886 = vmatprep.subr.mxu0 0.0
        %887 = vmatpush1.msra.mxu0 0.0
        %888 = vmatprep.mubr.f32.mxu0 0.0
        %889 = vmatmul.mubr.f32.gmra.mrb[0].mxu0 %v819
        %v890 = vpop.f32.mrb[0].mxu0
        %v891 = vadd.f32 %v807, %v890
        %v892 = vpop.f32.mrb[0].mxu0
        %893 = vmatprep.mubr.f32.mxu0 0.0
        %894 = vmatmul.mubr.f32.gmra.mrb[0].mxu0 %v822
        %v895 = vpop.f32.mrb[0].mxu0
        %v896 = vadd.f32 %v810, %v895
        %v897 = vpop.f32.mrb[0].mxu0
        %898 = vdwg.mxu0
        %vm899 = vcmp.gt.f32.partialorder %v891, 0.0
        %vm900 = vcmp.gt.f32.partialorder %v896, 0.0
        %v901 = vmul.f32 %v891, 0.2
        %v902 = vmul.f32 %v896, 0.2
        %v903 = vsel %vm899, %v891, %v901
        %v904 = vsel %vm900, %v896, %v902
        %v905 = vmul.f32 %v903, 1.442695
        %v906 = vpow.pop %v905
        %v907 = vmul.f32 %v904, 1.442695
        %v908 = vpow.pop %v907
        %v909 = vld [vmem:[%s499] sm:$0xff]
        %v910 = vld [vmem:[%s499 + $0x8] sm:$0xff]
        %v911 = vld [vmem:[%s8] sm:$0xff]
        %v912 = vld [vmem:[%s9] sm:$0x1]
        %v914 = vlaneseq
        %v915 = vshrl.u32 %v914, 7
        %v916 = vsub.s32 0, %v915
        %v917 = vrot.slane %v912, %v916
        %vm919 = vcmask 64512
        %v921 = vsel %vm919, %v909, 0
        %v924 = vsel %vm919, %v910, 0
        %926 = vmatprep.subr.mxu0 0.0
        %927 = vmatpush1.msra.mxu0 %v911
        %928 = vmatprep.subr.mxu0 0.0
        %929 = vmatpush1.msra.mxu0 0.0
        %930 = vmatprep.subr.mxu0 0.0
        %931 = vmatpush1.msra.mxu0 0.0
        %932 = vmatprep.subr.mxu0 0.0
        %933 = vmatpush1.msra.mxu0 0.0
        %934 = vmatprep.subr.mxu0 0.0
        %935 = vmatpush1.msra.mxu0 0.0
        %936 = vmatprep.subr.mxu0 0.0
        %937 = vmatpush1.msra.mxu0 0.0
        %938 = vmatprep.subr.mxu0 0.0
        %939 = vmatpush1.msra.mxu0 0.0
        %940 = vmatprep.subr.mxu0 0.0
        %941 = vmatpush1.msra.mxu0 0.0
        %942 = vmatprep.subr.mxu0 0.0
        %943 = vmatpush1.msra.mxu0 0.0
        %944 = vmatprep.subr.mxu0 0.0
        %945 = vmatpush1.msra.mxu0 0.0
        %946 = vmatprep.subr.mxu0 0.0
        %947 = vmatpush1.msra.mxu0 0.0
        %948 = vmatprep.subr.mxu0 0.0
        %949 = vmatpush1.msra.mxu0 0.0
        %950 = vmatprep.subr.mxu0 0.0
        %951 = vmatpush1.msra.mxu0 0.0
        %952 = vmatprep.subr.mxu0 0.0
        %953 = vmatpush1.msra.mxu0 0.0
        %954 = vmatprep.subr.mxu0 0.0
        %955 = vmatpush1.msra.mxu0 0.0
        %956 = vmatprep.subr.mxu0 0.0
        %957 = vmatpush1.msra.mxu0 0.0
        %958 = vmatprep.subr.mxu0 0.0
        %959 = vmatpush1.msra.mxu0 0.0
        %960 = vmatprep.subr.mxu0 0.0
        %961 = vmatpush1.msra.mxu0 0.0
        %962 = vmatprep.subr.mxu0 0.0
        %963 = vmatpush1.msra.mxu0 0.0
        %964 = vmatprep.subr.mxu0 0.0
        %965 = vmatpush1.msra.mxu0 0.0
        %966 = vmatprep.subr.mxu0 0.0
        %967 = vmatpush1.msra.mxu0 0.0
        %968 = vmatprep.subr.mxu0 0.0
        %969 = vmatpush1.msra.mxu0 0.0
        %970 = vmatprep.subr.mxu0 0.0
        %971 = vmatpush1.msra.mxu0 0.0
        %972 = vmatprep.subr.mxu0 0.0
        %973 = vmatpush1.msra.mxu0 0.0
        %974 = vmatprep.subr.mxu0 0.0
        %975 = vmatpush1.msra.mxu0 0.0
        %976 = vmatprep.subr.mxu0 0.0
        %977 = vmatpush1.msra.mxu0 0.0
        %978 = vmatprep.subr.mxu0 0.0
        %979 = vmatpush1.msra.mxu0 0.0
        %980 = vmatprep.subr.mxu0 0.0
        %981 = vmatpush1.msra.mxu0 0.0
        %982 = vmatprep.subr.mxu0 0.0
        %983 = vmatpush1.msra.mxu0 0.0
        %984 = vmatprep.subr.mxu0 0.0
        %985 = vmatpush1.msra.mxu0 0.0
        %986 = vmatprep.subr.mxu0 0.0
        %987 = vmatpush1.msra.mxu0 0.0
        %988 = vmatprep.subr.mxu0 0.0
        %989 = vmatpush1.msra.mxu0 0.0
        %990 = vmatprep.mubr.f32.mxu0 0.0
        %991 = vmatmul.mubr.f32.gmra.mrb[0].mxu0 %v921
        %v992 = vpop.f32.mrb[0].mxu0
        %v993 = vadd.f32 %v917, %v992
        %v994 = vpop.f32.mrb[0].mxu0
        %995 = vmatprep.mubr.f32.mxu0 0.0
        %996 = vmatmul.mubr.f32.gmra.mrb[0].mxu0 %v924
        %v997 = vpop.f32.mrb[0].mxu0
        %v998 = vadd.f32 %v917, %v997
        %v999 = vpop.f32.mrb[0].mxu0
        %1000 = vdwg.mxu0
        %v1001 = vmax.f32 %v993, 0.0
        %v1002 = vmax.f32 %v998, 0.0
        %v1003 = vld [vmem:[%s10] sm:$0xff]
        %v1004 = vld [vmem:[%s10 + $0x8] sm:$0xff]
        %s1005 = sld [smem:[#allocation6]]
        %v1006 = vstv %s1005
        %v1008 = vsel %vm723, %v1001, 0
        %v1011 = vsel %vm723, %v1002, 0
        %1013 = vmatprep.subr.mxu0 0.0
        %1014 = vmatpush1.msra.mxu0 %v1003
        %1015 = vmatprep.subr.mxu0 0.0
        %1016 = vmatpush1.msra.mxu0 %v1004
        %1017 = vmatprep.subr.mxu0 0.0
        %1018 = vmatpush1.msra.mxu0 0.0
        %1019 = vmatprep.subr.mxu0 0.0
        %1020 = vmatpush1.msra.mxu0 0.0
        %1021 = vmatprep.subr.mxu0 0.0
        %1022 = vmatpush1.msra.mxu0 0.0
        %1023 = vmatprep.subr.mxu0 0.0
        %1024 = vmatpush1.msra.mxu0 0.0
        %1025 = vmatprep.subr.mxu0 0.0
        %1026 = vmatpush1.msra.mxu0 0.0
        %1027 = vmatprep.subr.mxu0 0.0
        %1028 = vmatpush1.msra.mxu0 0.0
        %1029 = vmatprep.subr.mxu0 0.0
        %1030 = vmatpush1.msra.mxu0 0.0
        %1031 = vmatprep.subr.mxu0 0.0
        %1032 = vmatpush1.msra.mxu0 0.0
        %1033 = vmatprep.subr.mxu0 0.0
        %1034 = vmatpush1.msra.mxu0 0.0
        %1035 = vmatprep.subr.mxu0 0.0
        %1036 = vmatpush1.msra.mxu0 0.0
        %1037 = vmatprep.subr.mxu0 0.0
        %1038 = vmatpush1.msra.mxu0 0.0
        %1039 = vmatprep.subr.mxu0 0.0
        %1040 = vmatpush1.msra.mxu0 0.0
        %1041 = vmatprep.subr.mxu0 0.0
        %1042 = vmatpush1.msra.mxu0 0.0
        %1043 = vmatprep.subr.mxu0 0.0
        %1044 = vmatpush1.msra.mxu0 0.0
        %1045 = vmatprep.subr.mxu0 0.0
        %1046 = vmatpush1.msra.mxu0 0.0
        %1047 = vmatprep.subr.mxu0 0.0
        %1048 = vmatpush1.msra.mxu0 0.0
        %1049 = vmatprep.subr.mxu0 0.0
        %1050 = vmatpush1.msra.mxu0 0.0
        %1051 = vmatprep.subr.mxu0 0.0
        %1052 = vmatpush1.msra.mxu0 0.0
        %1053 = vmatprep.subr.mxu0 0.0
        %1054 = vmatpush1.msra.mxu0 0.0
        %1055 = vmatprep.subr.mxu0 0.0
        %1056 = vmatpush1.msra.mxu0 0.0
        %1057 = vmatprep.subr.mxu0 0.0
        %1058 = vmatpush1.msra.mxu0 0.0
        %1059 = vmatprep.subr.mxu0 0.0
        %1060 = vmatpush1.msra.mxu0 0.0
        %1061 = vmatprep.subr.mxu0 0.0
        %1062 = vmatpush1.msra.mxu0 0.0
        %1063 = vmatprep.subr.mxu0 0.0
        %1064 = vmatpush1.msra.mxu0 0.0
        %1065 = vmatprep.subr.mxu0 0.0
        %1066 = vmatpush1.msra.mxu0 0.0
        %1067 = vmatprep.subr.mxu0 0.0
        %1068 = vmatpush1.msra.mxu0 0.0
        %1069 = vmatprep.subr.mxu0 0.0
        %1070 = vmatpush1.msra.mxu0 0.0
        %1071 = vmatprep.subr.mxu0 0.0
        %1072 = vmatpush1.msra.mxu0 0.0
        %1073 = vmatprep.subr.mxu0 0.0
        %1074 = vmatpush1.msra.mxu0 0.0
        %1075 = vmatprep.subr.mxu0 0.0
        %1076 = vmatpush1.msra.mxu0 0.0
        %1077 = vmatprep.mubr.f32.mxu0 0.0
        %1078 = vmatmul.mubr.f32.gmra.mrb[0].mxu0 %v1008
        %v1079 = vpop.f32.mrb[0].mxu0
        %v1080 = vadd.f32 %v1006, %v1079
        %v1081 = vpop.f32.mrb[0].mxu0
        %1082 = vmatprep.mubr.f32.mxu0 0.0
        %1083 = vmatmul.mubr.f32.gmra.mrb[0].mxu0 %v1011
        %v1084 = vpop.f32.mrb[0].mxu0
        %v1085 = vadd.f32 %v1006, %v1084
        %v1086 = vpop.f32.mrb[0].mxu0
        %1087 = vdwg.mxu0
        %v1088 = vmul.f32 %v1080, 1.442695
        %v1089 = vpow.pop %v1088
        %v1090 = vmul.f32 %v1085, 1.442695
        %v1091 = vpow.pop %v1090
        %v1092 = vld [vmem:[%s7] sm:$0x3]
        %vm1093 = vcmask 15360
        %v1095 = vsel %vm1093, %v906, 0
        %v1098 = vsel %vm1093, %v908, 0
        %vm1100 = vcmask 1041408
        %v1102 = vsel %vm1100, %v1092, 0
        %1104 = vmatprep.subr.mxu0 0.0
        %1105 = vmatpush1.msra.mxu0 %v1102
        %1106 = vmatprep.subr.mxu0 0.0
        %1107 = vmatpush1.msra.mxu0 0.0
        %1108 = vmatprep.subr.mxu0 0.0
        %1109 = vmatpush1.msra.mxu0 0.0
        %1110 = vmatprep.subr.mxu0 0.0
        %1111 = vmatpush1.msra.mxu0 0.0
        %1112 = vmatprep.subr.mxu0 0.0
        %1113 = vmatpush1.msra.mxu0 0.0
        %1114 = vmatprep.subr.mxu0 0.0
        %1115 = vmatpush1.msra.mxu0 0.0
        %1116 = vmatprep.subr.mxu0 0.0
        %1117 = vmatpush1.msra.mxu0 0.0
        %1118 = vmatprep.subr.mxu0 0.0
        %1119 = vmatpush1.msra.mxu0 0.0
        %1120 = vmatprep.subr.mxu0 0.0
        %1121 = vmatpush1.msra.mxu0 0.0
        %1122 = vmatprep.subr.mxu0 0.0
        %1123 = vmatpush1.msra.mxu0 0.0
        %1124 = vmatprep.subr.mxu0 0.0
        %1125 = vmatpush1.msra.mxu0 0.0
        %1126 = vmatprep.subr.mxu0 0.0
        %1127 = vmatpush1.msra.mxu0 0.0
        %1128 = vmatprep.subr.mxu0 0.0
        %1129 = vmatpush1.msra.mxu0 0.0
        %1130 = vmatprep.subr.mxu0 0.0
        %1131 = vmatpush1.msra.mxu0 0.0
        %1132 = vmatprep.subr.mxu0 0.0
        %1133 = vmatpush1.msra.mxu0 0.0
        %1134 = vmatprep.subr.mxu0 0.0
        %1135 = vmatpush1.msra.mxu0 0.0
        %1136 = vmatprep.subr.mxu0 0.0
        %1137 = vmatpush1.msra.mxu0 0.0
        %1138 = vmatprep.subr.mxu0 0.0
        %1139 = vmatpush1.msra.mxu0 0.0
        %1140 = vmatprep.subr.mxu0 0.0
        %1141 = vmatpush1.msra.mxu0 0.0
        %1142 = vmatprep.subr.mxu0 0.0
        %1143 = vmatpush1.msra.mxu0 0.0
        %1144 = vmatprep.subr.mxu0 0.0
        %1145 = vmatpush1.msra.mxu0 0.0
        %1146 = vmatprep.subr.mxu0 0.0
        %1147 = vmatpush1.msra.mxu0 0.0
        %1148 = vmatprep.subr.mxu0 0.0
        %1149 = vmatpush1.msra.mxu0 0.0
        %1150 = vmatprep.subr.mxu0 0.0
        %1151 = vmatpush1.msra.mxu0 0.0
        %1152 = vmatprep.subr.mxu0 0.0
        %1153 = vmatpush1.msra.mxu0 0.0
        %1154 = vmatprep.subr.mxu0 0.0
        %1155 = vmatpush1.msra.mxu0 0.0
        %1156 = vmatprep.subr.mxu0 0.0
        %1157 = vmatpush1.msra.mxu0 0.0
        %1158 = vmatprep.subr.mxu0 0.0
        %1159 = vmatpush1.msra.mxu0 0.0
        %1160 = vmatprep.subr.mxu0 0.0
        %1161 = vmatpush1.msra.mxu0 0.0
        %1162 = vmatprep.subr.mxu0 0.0
        %1163 = vmatpush1.msra.mxu0 0.0
        %1164 = vmatprep.subr.mxu0 0.0
        %1165 = vmatpush1.msra.mxu0 0.0
        %1166 = vmatprep.subr.mxu0 0.0
        %1167 = vmatpush1.msra.mxu0 0.0
        %1168 = vmatprep.mubr.f32.mxu0 0.0
        %1169 = vmatmul.mubr.f32.gmra.mrb[0].mxu0 %v1095
        %v1170 = vpop.f32.mrb[0].mxu0
        %v1171 = vadd.f32 0.0, %v1170
        %v1172 = vpop.f32.mrb[0].mxu0
        %1173 = vmatprep.mubr.f32.mxu0 0.0
        %1174 = vmatmul.mubr.f32.gmra.mrb[0].mxu0 %v1098
        %v1175 = vpop.f32.mrb[0].mxu0
        %v1176 = vadd.f32 0.0, %v1175
        %v1177 = vpop.f32.mrb[0].mxu0
        %1178 = vdwg.mxu0
        %v1179 = vmul.f32 %v762, %v1171
        %v1180 = vmul.f32 %v765, %v1176
        %1182 = vset.pattern.permute.xlu0 0
        %1183 = vperm.xlu0 %1182, %v1089
        %v1184 = vpop.permute.xlu0 %1183
        %1187 = vset.pattern.permute.xlu0 0
        %1188 = vperm.xlu0 %1187, %v1091
        %v1189 = vpop.permute.xlu0 %1188
        %v1191 = vmul.f32 %v762, %v1184
        %v1192 = vmul.f32 %v765, %v1189
        %1195 = vrot.lane.b32.xlu0 %v1191, 32
        %v1196 = vpop.permute.xlu0 %1195
        %1197 = vrot.lane.b32.xlu0 %v1192, 32
        %v1198 = vpop.permute.xlu0 %1197
        %v1201 = vsel %vm817, %v1179, %v1196
        %v1202 = vsel %vm817, %v1180, %v1198
        %1203 = vrot.lane.b32.xlu0 %v1089, 2
        %v1204 = vpop.permute.xlu0 %1203
        %1205 = vrot.lane.b32.xlu0 %v1091, 2
        %v1206 = vpop.permute.xlu0 %1205
        %v1209 = vsel %vm1093, %v906, %v1204
        %v1210 = vsel %vm1093, %v908, %v1206
        %v1211 = vld [vmem:[#allocation4] sm:$0xff]
        %v1212 = vld [vmem:[#allocation4 + $0x8] sm:$0xff]
        %v1213 = vpack.c.bf16 %v1202, %v1201
        %1214 = vxpose.xlu0.c.b16.start [1/8] %v721, 128
        %1215 = vxpose.xlu0.c.b16.cont [2/8] 0, 128
        %1216 = vxpose.xlu0.c.b16.cont [3/8] 0, 128
        %1217 = vxpose.xlu0.c.b16.cont [4/8] 0, 128
        %1218 = vxpose.xlu0.c.b16.cont [5/8] 0, 128
        %1219 = vxpose.xlu0.c.b16.cont [6/8] 0, 128
        %1220 = vxpose.xlu0.c.b16.cont [7/8] 0, 128
        %1221 = vxpose.xlu0.c.b16.end [8/8] 0, 128
        %v1222 = vpop.trf.xlu0
        %v1223 = vpop.trf.xlu0
        %v1224 = vpop.trf.xlu0
        %v1225 = vpop.trf.xlu0
        %v1226 = vpop.trf.xlu0
        %v1227 = vpop.trf.xlu0
        %v1228 = vpop.trf.xlu0
        %v1229 = vpop.trf.xlu0
        %v1231 = vsel %vm723, %v1222, 0
        %1233 = vmatprep.subr.bf16.mxu0 0
        %1234 = vmatpush1.bf16.msra.mxu0 %v1213
        %1235 = vmatprep.subr.bf16.mxu0 0
        %1236 = vmatpush1.bf16.msra.mxu0 0
        %1237 = vmatprep.subr.bf16.mxu0 0
        %1238 = vmatpush1.bf16.msra.mxu0 0
        %1239 = vmatprep.subr.bf16.mxu0 0
        %1240 = vmatpush1.bf16.msra.mxu0 0
        %1241 = vmatprep.subr.bf16.mxu0 0
        %1242 = vmatpush1.bf16.msra.mxu0 0
        %1243 = vmatprep.subr.bf16.mxu0 0
        %1244 = vmatpush1.bf16.msra.mxu0 0
        %1245 = vmatprep.subr.bf16.mxu0 0
        %1246 = vmatpush1.bf16.msra.mxu0 0
        %1247 = vmatprep.subr.bf16.mxu0 0
        %1248 = vmatpush1.bf16.msra.mxu0 0
        %1249 = vmatprep.subr.bf16.mxu0 0
        %1250 = vmatpush1.bf16.msra.mxu0 0
        %1251 = vmatprep.subr.bf16.mxu0 0
        %1252 = vmatpush1.bf16.msra.mxu0 0
        %1253 = vmatprep.subr.bf16.mxu0 0
        %1254 = vmatpush1.bf16.msra.mxu0 0
        %1255 = vmatprep.subr.bf16.mxu0 0
        %1256 = vmatpush1.bf16.msra.mxu0 0
        %1257 = vmatprep.subr.bf16.mxu0 0
        %1258 = vmatpush1.bf16.msra.mxu0 0
        %1259 = vmatprep.subr.bf16.mxu0 0
        %1260 = vmatpush1.bf16.msra.mxu0 0
        %1261 = vmatprep.subr.bf16.mxu0 0
        %1262 = vmatpush1.bf16.msra.mxu0 0
        %1263 = vmatprep.subr.bf16.mxu0 0
        %1264 = vmatpush1.bf16.msra.mxu0 0
        %1265 = vmatprep.mubr.bf16.mxu0 0
        %1266 = vmatmul.mubr.bf16.gmra.mrb[0].mxu0 %v1231
        %v1267 = vpop.f32.mrb[0].mxu0
        %v1268 = vadd.f32 0.0, %v1267
        %v1269 = vpop.f32.mrb[0].mxu0
        %v1270 = vpop.f32.mrb[0].mxu0
        %v1271 = vadd.f32 0.0, %v1270
        %v1272 = vpop.f32.mrb[0].mxu0
        %1273 = vdwg.mxu0
        %v1274 = vadd.f32 %v1211, %v1268
        %v1275 = vadd.f32 %v1212, %v1271
        %vm1276 = vcmask 523264
        %1277 = vst.msk [vmem:[#allocation4] sm:$0xff] %vm1276, %v1274
        %1278 = vst.msk [vmem:[#allocation4 + $0x8] sm:$0xff] %vm1276, %v1275
        %v1279 = vld [vmem:[#allocation5] sm:$0xff]
        %v1280 = vld [vmem:[#allocation5 + $0x8] sm:$0xff]
        %v1281 = vpack.c.bf16 %v1210, %v1209
        %1282 = vmatprep.subr.bf16.mxu0 0
        %1283 = vmatpush1.bf16.msra.mxu0 %v1281
        %1284 = vmatprep.subr.bf16.mxu0 0
        %1285 = vmatpush1.bf16.msra.mxu0 0
        %1286 = vmatprep.subr.bf16.mxu0 0
        %1287 = vmatpush1.bf16.msra.mxu0 0
        %1288 = vmatprep.subr.bf16.mxu0 0
        %1289 = vmatpush1.bf16.msra.mxu0 0
        %1290 = vmatprep.subr.bf16.mxu0 0
        %1291 = vmatpush1.bf16.msra.mxu0 0
        %1292 = vmatprep.subr.bf16.mxu0 0
        %1293 = vmatpush1.bf16.msra.mxu0 0
        %1294 = vmatprep.subr.bf16.mxu0 0
        %1295 = vmatpush1.bf16.msra.mxu0 0
        %1296 = vmatprep.subr.bf16.mxu0 0
        %1297 = vmatpush1.bf16.msra.mxu0 0
        %1298 = vmatprep.subr.bf16.mxu0 0
        %1299 = vmatpush1.bf16.msra.mxu0 0
        %1300 = vmatprep.subr.bf16.mxu0 0
        %1301 = vmatpush1.bf16.msra.mxu0 0
        %1302 = vmatprep.subr.bf16.mxu0 0
        %1303 = vmatpush1.bf16.msra.mxu0 0
        %1304 = vmatprep.subr.bf16.mxu0 0
        %1305 = vmatpush1.bf16.msra.mxu0 0
        %1306 = vmatprep.subr.bf16.mxu0 0
        %1307 = vmatpush1.bf16.msra.mxu0 0
        %1308 = vmatprep.subr.bf16.mxu0 0
        %1309 = vmatpush1.bf16.msra.mxu0 0
        %1310 = vmatprep.subr.bf16.mxu0 0
        %1311 = vmatpush1.bf16.msra.mxu0 0
        %1312 = vmatprep.subr.bf16.mxu0 0
        %1313 = vmatpush1.bf16.msra.mxu0 0
        %1314 = vmatprep.mubr.bf16.mxu0 0
        %1315 = vmatmul.mubr.bf16.gmra.mrb[0].mxu0 %v1231
        %v1316 = vpop.f32.mrb[0].mxu0
        %v1317 = vadd.f32 0.0, %v1316
        %v1318 = vpop.f32.mrb[0].mxu0
        %v1319 = vpop.f32.mrb[0].mxu0
        %v1320 = vadd.f32 0.0, %v1319
        %v1321 = vpop.f32.mrb[0].mxu0
        %1322 = vdwg.mxu0
        %v1323 = vadd.f32 %v1279, %v1317
        %v1324 = vadd.f32 %v1280, %v1320
        %vm1325 = vcmask 23552
        %1326 = vst.msk [vmem:[#allocation5] sm:$0xff] %vm1325, %v1323
        %1327 = vst.msk [vmem:[#allocation5 + $0x8] sm:$0xff] %vm1325, %v1324
        %p1328 = scmp.eq.s32.totalorder %s27, 1
        // Predicated region
        $region81: #{tpu_custom_call.1} parent=75 // pred_check
          %p1329 = pneg %p1328
        $region82: #{tpu_custom_call.1} parent=75 // pred_check_branch
          %1331 = sbr.rel (%p1329) target = $region84
        $region83: #{tpu_custom_call.1} parent=75 // pred_region
          %v1332 = vld [vmem:[#allocation4] sm:$0xff]
          %v1333 = vld [vmem:[#allocation4 + $0x8] sm:$0xff]
          %v1334 = vld [vmem:[#allocation5] sm:$0xff]
          %v1335 = vld [vmem:[#allocation5 + $0x8] sm:$0xff]
          %v1336 = vld [vmem:[%s7] sm:$0x3]
          %v1338 = vsel %vm1093, %v1334, 0
          %v1341 = vsel %vm1093, %v1335, 0
          %v1344 = vsel %vm1100, %v1336, 0
          %1346 = vmatprep.subr.mxu0 0.0
          %1347 = vmatpush1.msra.mxu0 %v1344
          %1348 = vmatprep.subr.mxu0 0.0
          %1349 = vmatpush1.msra.mxu0 0.0
          %1350 = vmatprep.subr.mxu0 0.0
          %1351 = vmatpush1.msra.mxu0 0.0
          %1352 = vmatprep.subr.mxu0 0.0
          %1353 = vmatpush1.msra.mxu0 0.0
          %1354 = vmatprep.subr.mxu0 0.0
          %1355 = vmatpush1.msra.mxu0 0.0
          %1356 = vmatprep.subr.mxu0 0.0
          %1357 = vmatpush1.msra.mxu0 0.0
          %1358 = vmatprep.subr.mxu0 0.0
          %1359 = vmatpush1.msra.mxu0 0.0
          %1360 = vmatprep.subr.mxu0 0.0
          %1361 = vmatpush1.msra.mxu0 0.0
          %1362 = vmatprep.subr.mxu0 0.0
          %1363 = vmatpush1.msra.mxu0 0.0
          %1364 = vmatprep.subr.mxu0 0.0
          %1365 = vmatpush1.msra.mxu0 0.0
          %1366 = vmatprep.subr.mxu0 0.0
          %1367 = vmatpush1.msra.mxu0 0.0
          %1368 = vmatprep.subr.mxu0 0.0
          %1369 = vmatpush1.msra.mxu0 0.0
          %1370 = vmatprep.subr.mxu0 0.0
          %1371 = vmatpush1.msra.mxu0 0.0
          %1372 = vmatprep.subr.mxu0 0.0
          %1373 = vmatpush1.msra.mxu0 0.0
          %1374 = vmatprep.subr.mxu0 0.0
          %1375 = vmatpush1.msra.mxu0 0.0
          %1376 = vmatprep.subr.mxu0 0.0
          %1377 = vmatpush1.msra.mxu0 0.0
          %1378 = vmatprep.subr.mxu0 0.0
          %1379 = vmatpush1.msra.mxu0 0.0
          %1380 = vmatprep.subr.mxu0 0.0
          %1381 = vmatpush1.msra.mxu0 0.0
          %1382 = vmatprep.subr.mxu0 0.0
          %1383 = vmatpush1.msra.mxu0 0.0
          %1384 = vmatprep.subr.mxu0 0.0
          %1385 = vmatpush1.msra.mxu0 0.0
          %1386 = vmatprep.subr.mxu0 0.0
          %1387 = vmatpush1.msra.mxu0 0.0
          %1388 = vmatprep.subr.mxu0 0.0
          %1389 = vmatpush1.msra.mxu0 0.0
          %1390 = vmatprep.subr.mxu0 0.0
          %1391 = vmatpush1.msra.mxu0 0.0
          %1392 = vmatprep.subr.mxu0 0.0
          %1393 = vmatpush1.msra.mxu0 0.0
          %1394 = vmatprep.subr.mxu0 0.0
          %1395 = vmatpush1.msra.mxu0 0.0
          %1396 = vmatprep.subr.mxu0 0.0
          %1397 = vmatpush1.msra.mxu0 0.0
          %1398 = vmatprep.subr.mxu0 0.0
          %1399 = vmatpush1.msra.mxu0 0.0
          %1400 = vmatprep.subr.mxu0 0.0
          %1401 = vmatpush1.msra.mxu0 0.0
          %1402 = vmatprep.subr.mxu0 0.0
          %1403 = vmatpush1.msra.mxu0 0.0
          %1404 = vmatprep.subr.mxu0 0.0
          %1405 = vmatpush1.msra.mxu0 0.0
          %1406 = vmatprep.subr.mxu0 0.0
          %1407 = vmatpush1.msra.mxu0 0.0
          %1408 = vmatprep.subr.mxu0 0.0
          %1409 = vmatpush1.msra.mxu0 0.0
          %1410 = vmatprep.mubr.f32.mxu0 0.0
          %1411 = vmatmul.mubr.f32.gmra.mrb[0].mxu0 %v1338
          %v1412 = vpop.f32.mrb[0].mxu0
          %v1413 = vadd.f32 1e-09, %v1412
          %v1414 = vpop.f32.mrb[0].mxu0
          %1415 = vmatprep.mubr.f32.mxu0 0.0
          %1416 = vmatmul.mubr.f32.gmra.mrb[0].mxu0 %v1341
          %v1417 = vpop.f32.mrb[0].mxu0
          %v1418 = vadd.f32 1e-09, %v1417
          %v1419 = vpop.f32.mrb[0].mxu0
          %1420 = vdwg.mxu0
          %v1421 = vrcp.pop %v1413
          %v1422 = vmul.f32 %v1332, %v1421
          %v1423 = vrcp.pop %v1418
          %v1424 = vmul.f32 %v1333, %v1423
          %v1425 = vadd.f32 %v1334, 1e-09
          %v1426 = vadd.f32 %v1335, 1e-09
          %1428 = vset.pattern.permute.xlu0 2
          %1429 = vperm.xlu0 %1428, %v1425
          %v1430 = vpop.permute.xlu0 %1429
          %1433 = vset.pattern.permute.xlu0 2
          %1434 = vperm.xlu0 %1433, %v1426
          %v1435 = vpop.permute.xlu0 %1434
          %v1437 = vrcp.pop %v1430
          %v1438 = vmul.f32 %v1332, %v1437
          %v1439 = vrcp.pop %v1435
          %v1440 = vmul.f32 %v1333, %v1439
          %v1441 = vsel %vm817, %v1422, %v1438
          %v1442 = vsel %vm817, %v1424, %v1440
          %v1443 = vld [vmem:[%s12] sm:$0xff]
          %v1444 = vld [vmem:[%s12 + $0x8] sm:$0xff]
          %v1445 = vld [vmem:[%s12 + $0x10] sm:$0xff]
          %v1446 = vld [vmem:[%s12 + $0x18] sm:$0xff]
          %v1447 = vld [vmem:[%s12 + $0x20] sm:$0xff]
          %v1448 = vld [vmem:[%s12 + $0x28] sm:$0xff]
          %v1449 = vld [vmem:[%s12 + $0x30] sm:$0xff]
          %v1450 = vld [vmem:[%s12 + $0x38] sm:$0xff]
          %v1451 = vld [vmem:[%s13] sm:$0x1]
          %v1453 = vlaneseq
          %v1454 = vshrl.u32 %v1453, 7
          %v1455 = vsub.s32 0, %v1454
          %v1456 = vrot.slane %v1451, %v1455
          %v1459 = vsel %vm1276, %v1441, 0
          %v1462 = vsel %vm1276, %v1442, 0
          %1464 = vmatprep.subr.mxu0 0.0
          %1465 = vmatpush1.msra.mxu0 %v1443
          %1466 = vmatprep.subr.mxu0 0.0
          %1467 = vmatpush1.msra.mxu0 %v1444
          %1468 = vmatprep.subr.mxu0 0.0
          %1469 = vmatpush1.msra.mxu0 %v1445
          %1470 = vmatprep.subr.mxu0 0.0
          %1471 = vmatpush1.msra.mxu0 %v1446
          %1472 = vmatprep.subr.mxu0 0.0
          %1473 = vmatpush1.msra.mxu0 %v1447
          %1474 = vmatprep.subr.mxu0 0.0
          %1475 = vmatpush1.msra.mxu0 %v1448
          %1476 = vmatprep.subr.mxu0 0.0
          %1477 = vmatpush1.msra.mxu0 %v1449
          %1478 = vmatprep.subr.mxu0 0.0
          %1479 = vmatpush1.msra.mxu0 %v1450
          %1480 = vmatprep.subr.mxu0 0.0
          %1481 = vmatpush1.msra.mxu0 0.0
          %1482 = vmatprep.subr.mxu0 0.0
          %1483 = vmatpush1.msra.mxu0 0.0
          %1484 = vmatprep.subr.mxu0 0.0
          %1485 = vmatpush1.msra.mxu0 0.0
          %1486 = vmatprep.subr.mxu0 0.0
          %1487 = vmatpush1.msra.mxu0 0.0
          %1488 = vmatprep.subr.mxu0 0.0
          %1489 = vmatpush1.msra.mxu0 0.0
          %1490 = vmatprep.subr.mxu0 0.0
          %1491 = vmatpush1.msra.mxu0 0.0
          %1492 = vmatprep.subr.mxu0 0.0
          %1493 = vmatpush1.msra.mxu0 0.0
          %1494 = vmatprep.subr.mxu0 0.0
          %1495 = vmatpush1.msra.mxu0 0.0
          %1496 = vmatprep.subr.mxu0 0.0
          %1497 = vmatpush1.msra.mxu0 0.0
          %1498 = vmatprep.subr.mxu0 0.0
          %1499 = vmatpush1.msra.mxu0 0.0
          %1500 = vmatprep.subr.mxu0 0.0
          %1501 = vmatpush1.msra.mxu0 0.0
          %1502 = vmatprep.subr.mxu0 0.0
          %1503 = vmatpush1.msra.mxu0 0.0
          %1504 = vmatprep.subr.mxu0 0.0
          %1505 = vmatpush1.msra.mxu0 0.0
          %1506 = vmatprep.subr.mxu0 0.0
          %1507 = vmatpush1.msra.mxu0 0.0
          %1508 = vmatprep.subr.mxu0 0.0
          %1509 = vmatpush1.msra.mxu0 0.0
          %1510 = vmatprep.subr.mxu0 0.0
          %1511 = vmatpush1.msra.mxu0 0.0
          %1512 = vmatprep.subr.mxu0 0.0
          %1513 = vmatpush1.msra.mxu0 0.0
          %1514 = vmatprep.subr.mxu0 0.0
          %1515 = vmatpush1.msra.mxu0 0.0
          %1516 = vmatprep.subr.mxu0 0.0
          %1517 = vmatpush1.msra.mxu0 0.0
          %1518 = vmatprep.subr.mxu0 0.0
          %1519 = vmatpush1.msra.mxu0 0.0
          %1520 = vmatprep.subr.mxu0 0.0
          %1521 = vmatpush1.msra.mxu0 0.0
          %1522 = vmatprep.subr.mxu0 0.0
          %1523 = vmatpush1.msra.mxu0 0.0
          %1524 = vmatprep.subr.mxu0 0.0
          %1525 = vmatpush1.msra.mxu0 0.0
          %1526 = vmatprep.subr.mxu0 0.0
          %1527 = vmatpush1.msra.mxu0 0.0
          %1528 = vmatprep.mubr.f32.mxu0 0.0
          %1529 = vmatmul.mubr.f32.gmra.mrb[0].mxu0 %v1459
          %v1530 = vpop.f32.mrb[0].mxu0
          %v1531 = vadd.f32 %v1456, %v1530
          %v1532 = vpop.f32.mrb[0].mxu0
          %1533 = vmatprep.mubr.f32.mxu0 0.0
          %1534 = vmatmul.mubr.f32.gmra.mrb[0].mxu0 %v1462
          %v1535 = vpop.f32.mrb[0].mxu0
          %v1536 = vadd.f32 %v1456, %v1535
          %v1537 = vpop.f32.mrb[0].mxu0
          %1538 = vdwg.mxu0
          %v1539 = vmax.f32 %v1531, 0.0
          %v1540 = vmax.f32 %v1536, 0.0
          %1541 = vst [vmem:[#allocation7] sm:$0xff] %v1539
          %1542 = vst [vmem:[#allocation7 + $0x8] sm:$0xff] %v1540
        $region84: #{tpu_custom_call.1} parent=75 // pred_fallthru
          _
        // Predicated region
        $region85: #{tpu_custom_call.1} parent=75 // pred_check
          %p1543 = pneg %p349
        $region86: #{tpu_custom_call.1} parent=75 // pred_check_branch
          %1545 = sbr.rel (%p1543) target = $region88
        $region87: #{tpu_custom_call.1} parent=75 // pred_region
          %s1547 = ssub.s32 256, 256
          %1548 = vsyncadd [#allocation8], %s1547
          %s1549 = sshll.u32 [#allocation7], 4
          %s1550 = int_to_ptr.vmem [resolvable:$true] %s1549
          %1555 = dma.vmem_to_hbm [thread:$0]  %s1550, 256, %s14, [#allocation8], 128, 128, 8
        $region88: #{tpu_custom_call.1} parent=75 // pred_fallthru
          _
        // Predicated region
        $region89: #{tpu_custom_call.1} parent=75 // pred_check
          %p1556 = pneg %p349
        $region90: #{tpu_custom_call.1} parent=75 // pred_check_branch
          %1558 = sbr.rel (%p1556) target = $region92
        $region91: #{tpu_custom_call.1} parent=75 // pred_region
          %1559 = dma.done [#allocation8], 256
        $region92: #{tpu_custom_call.1} parent=75 // pred_fallthru
          _
      $region76: #{tpu_custom_call.1} parent=5 // pred_fallthru
        _
      %p1560 = scmp.le.s32.totalorder 2, %s22
      // Predicated region
      $region93: #{tpu_custom_call.1} parent=5 // pred_check
        %p1561 = pneg %p1560
      $region94: #{tpu_custom_call.1} parent=5 // pred_check_branch
        %1563 = sbr.rel (%p1561) target = $region96
      $region95: #{tpu_custom_call.1} parent=5 // pred_region
        %s1564 = ssub.s32 %s22, 2
      $region96: #{tpu_custom_call.1} parent=5 // pred_fallthru
        _
    $region6: #{tpu_custom_call.1} parent=1 // loop_footer
      %s26 = sadd.s32 1, %s22
    $region7: #{tpu_custom_call.1} parent=1 // loop_footer_branch
      %21 = sbr.rel target = $region3
    $region8: #{tpu_custom_call.1} parent=1 // loop_exit
      _
    %1565 = vsyncpa [#allocation8], 1
    %s1566 = scalar_lea.sflag [#allocation8], 1
    %1567 = vsyncpa %s1566, 1

</llo_original>
